<compile_context>
chip_gen: v6e
topology: v6e:2x2x1
jax: 0.10.0
libtpu: 0.0.40
codegen_flags: <defaults>
</compile_context>

<pallas_src>
import functools

import jax
import jax.numpy as jnp
from jax.experimental import pallas as pl
from jax.experimental.pallas import tpu as pltpu


def _relatt_kernel(x_ref, gamma_ref, beta_ref, wqkv_ref, wout_ref, bout_ref,
                   bias_ref, o_ref, o_scratch, *, heads, dim_head, eps):
    bb, n, c = x_ref.shape
    inner = heads * dim_head
    oup_pad = o_ref.shape[-1]
    rows = bb * n

    # ---- LayerNorm (f32 statistics) over channels, batch folded into rows ----
    x = x_ref[...].reshape(rows, c).astype(jnp.float32)
    mean = jnp.mean(x, axis=-1, keepdims=True)
    var = jnp.mean(jnp.square(x - mean), axis=-1, keepdims=True)
    xn = (x - mean) * jax.lax.rsqrt(var + eps)
    xn = xn * gamma_ref[...] + beta_ref[...]

    # ---- qkv projection: one (rows, c) @ (c, 3*inner) bf16 MXU matmul ----
    # (softmax scale is already folded into the W_q columns in the wrapper)
    qkv = jnp.dot(xn.astype(jnp.bfloat16), wqkv_ref[...],
                  preferred_element_type=jnp.float32).astype(jnp.bfloat16)

    # Slice q/k/v once at inner-dim boundaries and restore the batch axis so the
    # per-head matmuls below are batched over the block batch (one dot_general push
    # per head instead of bb of them).
    q3 = qkv[:, :inner].reshape(bb, n, inner)
    k3 = qkv[:, inner:2 * inner].reshape(bb, n, inner)
    v3 = qkv[:, 2 * inner:].reshape(bb, n, inner)

    # ---- per-head attention, batched over the block batch ----
    # Each head's result goes straight into VMEM scratch: no concatenates, and the
    # head's intermediates die at the store (bounded live ranges even at large bb).
    # TODO(synk): for large n, switch to a KV-tiled online-softmax loop and stream
    # rel_bias per head / KV tile via an extra grid axis to fit v7x's 64 MiB VMEM.
    for h in range(heads):
        lo, hi = h * dim_head, (h + 1) * dim_head
        qh = q3[:, :, lo:hi]                                     # (bb, n, d) bf16
        kh = k3[:, :, lo:hi]
        vh = v3[:, :, lo:hi]

        # q @ k^T without materializing a transpose, batched over bb.
        dots = jax.lax.dot_general(
            qh, kh, dimension_numbers=(((2,), (2,)), ((0,), (0,))),
            preferred_element_type=jnp.float32)                  # (bb, n, n) f32
        dots = dots + bias_ref[h]                                # f32 relative bias

        # numerically-stable softmax; divide -> EUP approx reciprocal
        dots = dots - jnp.max(dots, axis=-1, keepdims=True)
        e = jnp.exp(dots)
        inv = pl.reciprocal(jnp.sum(e, axis=-1, keepdims=True), approx=True)

        oh = jax.lax.dot_general(
            e.astype(jnp.bfloat16), vh,
            dimension_numbers=(((2,), (1,)), ((0,), (0,))),
            preferred_element_type=jnp.float32)                  # (bb, n, d) f32
        # Normalize the (n, d) head output instead of the (n, n) attention matrix.
        o_scratch[:, :, lo:hi] = (oh * inv).astype(jnp.bfloat16)

    # ---- single output projection (rows, inner) @ (inner, oup_pad) + bias ----
    o_all = o_scratch[...].reshape(rows, inner)
    proj = jnp.dot(o_all, wout_ref[...], preferred_element_type=jnp.float32)
    proj = proj + bout_ref[...]
    o_ref[...] = proj.reshape(bb, n, oup_pad).astype(o_ref.dtype)


def make_relative_bias(table, ih, iw):
    """Reproduce the relative_index gather from Attention.__init__ (plain JAX glue)."""
    n = ih * iw
    coords = jnp.stack(jnp.meshgrid(jnp.arange(ih), jnp.arange(iw), indexing="ij"))
    coords = coords.reshape(2, -1)                          # (2, n)
    rel = coords[:, :, None] - coords[:, None, :]           # (2, n, n)
    rel = rel.at[0].add(ih - 1)
    rel = rel.at[1].add(iw - 1)
    rel = rel.at[0].multiply(2 * iw - 1)
    rel_index = jnp.transpose(rel, (1, 2, 0)).sum(-1).reshape(-1)   # (n*n,)
    bias = table[rel_index]                                 # (n*n, heads)
    heads = table.shape[1]
    return bias.reshape(n, n, heads).transpose(2, 0, 1)     # (heads, n, n)


def _pick_block_batch(batch, n, max_rows=1024):
    """Largest divisor of `batch` such that (a) the grid keeps >= 2 steps whenever
    batch >= 2 (v7x megacore sharding + DMA/compute pipelining) and (b) the block has
    at most `max_rows` rows (MXU M fill vs. VMEM / live-range budget)."""
    best = 1
    for cand in range(1, batch + 1):
        if batch % cand:
            continue
        if cand * n > max_rows:
            continue
        if batch >= 2 and batch // cand < 2:
            continue
        best = cand
    return best


def _vmem_limit_bytes(bb, n, c, inner, oup_pad, heads):
    """Scoped-VMEM budget sized from the actual block footprint (plus headroom) rather
    than a blanket 32 MiB, so XLA can co-schedule neighboring fusions."""
    f32, bf16 = 4, 2
    rows = bb * n
    blocks = 2 * rows * c * f32 + 2 * rows * oup_pad * f32       # x / out blocks, 2x-buffered
    consts = 2 * (c * 3 * inner * bf16 + inner * oup_pad * bf16
                  + oup_pad * f32 + heads * n * n * f32 + 2 * c * f32)
    scratch = rows * inner * bf16
    work = rows * 3 * inner * (f32 + bf16) + 3 * bb * n * n * f32 + rows * oup_pad * f32
    est = blocks + consts + scratch + work
    return min(64 * 1024 * 1024, max(8 * 1024 * 1024, 2 * est))


def rel_att_forward(x_nchw, params, *, heads, dim_head, eps=1e-5):
    gamma, beta, w_qkv, w_out, b_out, rel_bias = params
    B, C, IH, IW = x_nchw.shape
    n = IH * IW
    inner = heads * dim_head
    oup = w_out.shape[1]
    scale = float(dim_head) ** -0.5

    # NCHW -> (b, n, c) token layout (Rearrange glue).
    # TODO(synk): on v5e consider folding this transpose into the kernel via a
    # (bb, C, n) BlockSpec + in-kernel transpose to save one HBM round trip over x.
    x_tok = jnp.transpose(x_nchw, (0, 2, 3, 1)).reshape(B, n, C)

    # Fold softmax scale into W_q's columns; cast MXU weights to bf16.
    w_qkv_s = jnp.concatenate([w_qkv[:, :inner] * scale, w_qkv[:, inner:]], axis=1)
    w_qkv_bf = w_qkv_s.astype(jnp.bfloat16)

    # Pad the output lane dim to a multiple of 128 so the o_ref store is unmasked vst.
    # TODO(synk): on v5e (0.8 TB/s HBM) benchmark the unpadded masked-vst output (or a
    # bf16 output) against this 4x write amplification; keep the lane-dense store on v6e/v7x.
    oup_pad = ((oup + 127) // 128) * 128
    w_out_pad = jnp.zeros((inner, oup_pad), w_out.dtype).at[:, :oup].set(w_out)
    w_out_bf = w_out_pad.astype(jnp.bfloat16)
    b_out_pad = jnp.zeros((1, oup_pad), jnp.float32).at[:, :oup].set(b_out.reshape(1, oup))

    # Small n: keep the learned bias in f32 (64 KiB resident; no per-head conversions).
    rel_bias_f32 = rel_bias.astype(jnp.float32)
    gamma2 = gamma.reshape(1, C).astype(jnp.float32)
    beta2 = beta.reshape(1, C).astype(jnp.float32)

    bb = _pick_block_batch(B, n)
    grid = (B // bb,)

    kernel = functools.partial(_relatt_kernel, heads=heads, dim_head=dim_head, eps=eps)

    out_tok = pl.pallas_call(
        kernel,
        out_shape=jax.ShapeDtypeStruct((B, n, oup_pad), x_nchw.dtype),
        grid_spec=pltpu.PrefetchScalarGridSpec(
            num_scalar_prefetch=0,
            grid=grid,
            in_specs=[
                pl.BlockSpec((bb, n, C), lambda i: (i, 0, 0)),            # x tokens
                pl.BlockSpec((1, C), lambda i: (0, 0)),                   # LN gamma
                pl.BlockSpec((1, C), lambda i: (0, 0)),                   # LN beta
                pl.BlockSpec((C, 3 * inner), lambda i: (0, 0)),           # W_qkv^T (scaled, bf16)
                pl.BlockSpec((inner, oup_pad), lambda i: (0, 0)),         # W_out^T (padded, bf16)
                pl.BlockSpec((1, oup_pad), lambda i: (0, 0)),             # b_out (padded)
                pl.BlockSpec((heads, n, n), lambda i: (0, 0, 0)),         # rel bias (f32)
            ],
            out_specs=pl.BlockSpec((bb, n, oup_pad), lambda i: (i, 0, 0)),
            scratch_shapes=[pltpu.VMEM((bb, n, inner), jnp.bfloat16)],    # head-output staging
        ),
        compiler_params=pltpu.CompilerParams(
            dimension_semantics=("parallel",),
            vmem_limit_bytes=_vmem_limit_bytes(bb, n, C, inner, oup_pad, heads),
        ),
    )(x_tok, gamma2, beta2, w_qkv_bf, w_out_bf, b_out_pad, rel_bias_f32)

    out_tok = out_tok[..., :oup]                            # drop lane padding
    return jnp.transpose(out_tok.reshape(B, IH, IW, oup), (0, 3, 1, 2))


def rel_att_reference(x_nchw, params, *, heads, dim_head, eps=1e-5):
    """Pure-JAX f32 reference of the PyTorch forward for validation."""
    gamma, beta, w_qkv, w_out, b_out, rel_bias = params
    B, C, IH, IW = x_nchw.shape
    n = IH * IW
    inner = heads * dim_head
    x = jnp.transpose(x_nchw, (0, 2, 3, 1)).reshape(B, n, C)
    mean = x.mean(-1, keepdims=True)
    var = ((x - mean) ** 2).mean(-1, keepdims=True)
    xn = (x - mean) / jnp.sqrt(var + eps) * gamma + beta
    qkv = xn @ w_qkv
    q, k, v = jnp.split(qkv, 3, axis=-1)
    split = lambda t: t.reshape(B, n, heads, dim_head).transpose(0, 2, 1, 3)
    q, k, v = map(split, (q, k, v))
    dots = jnp.einsum("bhnd,bhmd->bhnm", q, k) * float(dim_head) ** -0.5
    dots = dots + rel_bias[None]
    attn = jax.nn.softmax(dots, axis=-1)
    out = jnp.einsum("bhnm,bhmd->bhnd", attn, v)
    out = out.transpose(0, 2, 1, 3).reshape(B, n, inner) @ w_out + b_out
    return jnp.transpose(out.reshape(B, IH, IW, -1), (0, 3, 1, 2))


if __name__ == "__main__":
    key = jax.random.PRNGKey(0)
    B, C, IH, IW = 2, 32, 8, 8            # x: (batch, inp, ih, iw)
    heads, dim_head, oup = 4, 16, 32
    inner = heads * dim_head

    k_x, k_qkv, k_out, k_b, k_tab = jax.random.split(key, 5)
    x = jax.random.normal(k_x, (B, C, IH, IW), jnp.float32)

    # Deterministic parameter init (shapes per Attention/PreNorm __init__).
    gamma = jnp.ones((1, C), jnp.float32)         # LayerNorm weight
    beta = jnp.zeros((1, C), jnp.float32)         # LayerNorm bias
    w_qkv = 0.05 * jax.random.normal(k_qkv, (C, 3 * inner), jnp.float32)   # to_qkv.weight^T
    w_out = 0.05 * jax.random.normal(k_out, (inner, oup), jnp.float32)     # to_out[0].weight^T
    b_out = 0.05 * jax.random.normal(k_b, (1, oup), jnp.float32)           # to_out[0].bias
    # relative_bias_table is zeros in __init__; use small randoms to exercise the path.
    table = 0.02 * jax.random.normal(k_tab, ((2 * IH - 1) * (2 * IW - 1), heads), jnp.float32)
    rel_bias = make_relative_bias(table, IH, IW)

    params = (gamma, beta, w_qkv, w_out, b_out, rel_bias)

    out = rel_att_forward(x, params, heads=heads, dim_head=dim_head)
    out = jax.block_until_ready(out)

    ref = rel_att_reference(x, params, heads=heads, dim_head=dim_head)
    assert out.shape == (B, oup, IH, IW)
    # Kernel uses bf16 MXU operands with f32 accumulation -> tolerance reflects bf16.
    assert jnp.allclose(out, ref, atol=1e-2, rtol=1e-2), float(jnp.max(jnp.abs(out - ref)))

    print("KERNEL_OK")
</pallas_src>

<mosaic_0001>
module attributes {stable_mosaic.version = 11 : i64} {
  func.func @_relatt_kernel(%arg0: i32, %arg1: memref<1x64x32xf32, #tpu.memory_space<vmem>>, %arg2: memref<1x32xf32, #tpu.memory_space<vmem>>, %arg3: memref<1x32xf32, #tpu.memory_space<vmem>>, %arg4: memref<32x192xbf16, #tpu.memory_space<vmem>>, %arg5: memref<64x128xbf16, #tpu.memory_space<vmem>>, %arg6: memref<1x128xf32, #tpu.memory_space<vmem>>, %arg7: memref<4x64x64xf32, #tpu.memory_space<vmem>>, %arg8: memref<1x64x128xf32, #tpu.memory_space<vmem>>, %arg9: memref<1x64x64xbf16, #tpu.memory_space<vmem>>) attributes {dimension_semantics = [#tpu.dimension_semantics<parallel>], iteration_bounds = array<i64: 2>, scalar_prefetch = 0 : i64, scratch_operands = 1 : i64, tpu.core_type = #tpu.core_type<tc>, window_params = [{transform_indices = @transform_0, window_bounds = array<i64: 1, 64, 32>}, {pipeline_mode = #tpu.pipeline_mode<synchronous>, transform_indices = @transform_1, window_bounds = array<i64: 1, 32>}, {pipeline_mode = #tpu.pipeline_mode<synchronous>, transform_indices = @transform_2, window_bounds = array<i64: 1, 32>}, {pipeline_mode = #tpu.pipeline_mode<synchronous>, transform_indices = @transform_3, window_bounds = array<i64: 32, 192>}, {pipeline_mode = #tpu.pipeline_mode<synchronous>, transform_indices = @transform_4, window_bounds = array<i64: 64, 128>}, {pipeline_mode = #tpu.pipeline_mode<synchronous>, transform_indices = @transform_5, window_bounds = array<i64: 1, 128>}, {pipeline_mode = #tpu.pipeline_mode<synchronous>, transform_indices = @transform_6, window_bounds = array<i64: 4, 64, 64>}, {transform_indices = @transform_7, window_bounds = array<i64: 1, 64, 128>}]} {
    %c0 = arith.constant 0 : index
    %c0_0 = arith.constant 0 : index
    %c0_1 = arith.constant 0 : index
    %0 = vector.load %arg1[%c0, %c0_0, %c0_1] : memref<1x64x32xf32, #tpu.memory_space<vmem>>, vector<1x64x32xf32>
    %1 = vector.shape_cast %0 : vector<1x64x32xf32> to vector<64x32xf32>
    %cst = arith.constant dense<0.000000e+00> : vector<64xf32>
    %2 = vector.multi_reduction <add>, %1, %cst [1] : vector<64x32xf32> to vector<64xf32>
    %3 = vector.shape_cast %2 : vector<64xf32> to vector<64x1xf32>
    %cst_2 = arith.constant 3.200000e+01 : f32
    %4 = vector.broadcast %cst_2 : f32 to vector<64x1xf32>
    %5 = arith.divf %3, %4 : vector<64x1xf32>
    %6 = vector.broadcast %5 : vector<64x1xf32> to vector<64x32xf32>
    %7 = arith.subf %1, %6 : vector<64x32xf32>
    %8 = arith.mulf %7, %7 : vector<64x32xf32>
    %cst_3 = arith.constant dense<0.000000e+00> : vector<64xf32>
    %9 = vector.multi_reduction <add>, %8, %cst_3 [1] : vector<64x32xf32> to vector<64xf32>
    %10 = vector.shape_cast %9 : vector<64xf32> to vector<64x1xf32>
    %cst_4 = arith.constant 3.200000e+01 : f32
    %11 = vector.broadcast %cst_4 : f32 to vector<64x1xf32>
    %12 = arith.divf %10, %11 : vector<64x1xf32>
    %13 = vector.broadcast %5 : vector<64x1xf32> to vector<64x32xf32>
    %14 = arith.subf %1, %13 : vector<64x32xf32>
    %cst_5 = arith.constant 9.99999974E-6 : f32
    %15 = vector.broadcast %cst_5 : f32 to vector<64x1xf32>
    %16 = arith.addf %12, %15 : vector<64x1xf32>
    %17 = math.rsqrt %16 : vector<64x1xf32>
    %18 = vector.broadcast %17 : vector<64x1xf32> to vector<64x32xf32>
    %19 = arith.mulf %14, %18 : vector<64x32xf32>
    %c0_6 = arith.constant 0 : index
    %c0_7 = arith.constant 0 : index
    %20 = vector.load %arg2[%c0_6, %c0_7] : memref<1x32xf32, #tpu.memory_space<vmem>>, vector<1x32xf32>
    %21 = vector.broadcast %20 : vector<1x32xf32> to vector<64x32xf32>
    %22 = arith.mulf %19, %21 : vector<64x32xf32>
    %c0_8 = arith.constant 0 : index
    %c0_9 = arith.constant 0 : index
    %23 = vector.load %arg3[%c0_8, %c0_9] : memref<1x32xf32, #tpu.memory_space<vmem>>, vector<1x32xf32>
    %24 = vector.broadcast %23 : vector<1x32xf32> to vector<64x32xf32>
    %25 = arith.addf %22, %24 : vector<64x32xf32>
    %26 = arith.truncf %25 : vector<64x32xf32> to vector<64x32xbf16>
    %c0_10 = arith.constant 0 : index
    %c0_11 = arith.constant 0 : index
    %27 = vector.load %arg4[%c0_10, %c0_11] : memref<32x192xbf16, #tpu.memory_space<vmem>>, vector<32x192xbf16>
    %cst_12 = arith.constant dense<0.000000e+00> : vector<64x192xf32>
    %28 = tpu.matmul %26, %27, %cst_12 {dimension_numbers = #tpu.dot_dimension_numbers<[1], [0], [0], [1], [0, 0, 1, 1], [], []>} : vector<64x32xbf16>, vector<32x192xbf16>, vector<64x192xf32> -> vector<64x192xf32>
    %29 = arith.truncf %28 : vector<64x192xf32> to vector<64x192xbf16>
    %30 = vector.extract_strided_slice %29 {offsets = [0, 0], sizes = [64, 64], strides = [1, 1]} : vector<64x192xbf16> to vector<64x64xbf16>
    %31 = vector.shape_cast %30 : vector<64x64xbf16> to vector<1x64x64xbf16>
    %32 = vector.extract_strided_slice %29 {offsets = [0, 64], sizes = [64, 64], strides = [1, 1]} : vector<64x192xbf16> to vector<64x64xbf16>
    %33 = vector.shape_cast %32 : vector<64x64xbf16> to vector<1x64x64xbf16>
    %34 = vector.extract_strided_slice %29 {offsets = [0, 128], sizes = [64, 64], strides = [1, 1]} : vector<64x192xbf16> to vector<64x64xbf16>
    %35 = vector.shape_cast %34 : vector<64x64xbf16> to vector<1x64x64xbf16>
    %36 = vector.extract_strided_slice %31 {offsets = [0, 0, 0], sizes = [1, 64, 16], strides = [1, 1, 1]} : vector<1x64x64xbf16> to vector<1x64x16xbf16>
    %37 = vector.extract_strided_slice %33 {offsets = [0, 0, 0], sizes = [1, 64, 16], strides = [1, 1, 1]} : vector<1x64x64xbf16> to vector<1x64x16xbf16>
    %38 = vector.extract_strided_slice %35 {offsets = [0, 0, 0], sizes = [1, 64, 16], strides = [1, 1, 1]} : vector<1x64x64xbf16> to vector<1x64x16xbf16>
    %cst_13 = arith.constant dense<0.000000e+00> : vector<1x64x64xf32>
    %39 = tpu.matmul %36, %37, %cst_13 {dimension_numbers = #tpu.dot_dimension_numbers<[2], [2], [1], [1], [0, 0, 0, 1, 1, 1], [0], [0]>} : vector<1x64x16xbf16>, vector<1x64x16xbf16>, vector<1x64x64xf32> -> vector<1x64x64xf32>
    %c0_14 = arith.constant 0 : index
    %c0_15 = arith.constant 0 : index
    %c0_16 = arith.constant 0 : index
    %40 = vector.load %arg7[%c0_14, %c0_15, %c0_16] : memref<4x64x64xf32, #tpu.memory_space<vmem>>, vector<1x64x64xf32>
    %41 = vector.shape_cast %40 : vector<1x64x64xf32> to vector<64x64xf32>
    %42 = vector.shape_cast %41 : vector<64x64xf32> to vector<1x64x64xf32>
    %43 = arith.addf %39, %42 : vector<1x64x64xf32>
    %cst_17 = arith.constant dense<0xFF800000> : vector<1x64xf32>
    %44 = vector.multi_reduction <maximumf>, %43, %cst_17 [2] : vector<1x64x64xf32> to vector<1x64xf32>
    %45 = vector.shape_cast %44 : vector<1x64xf32> to vector<1x64x1xf32>
    %46 = vector.broadcast %45 : vector<1x64x1xf32> to vector<1x64x64xf32>
    %47 = arith.subf %43, %46 : vector<1x64x64xf32>
    %48 = math.exp %47 : vector<1x64x64xf32>
    %cst_18 = arith.constant dense<0.000000e+00> : vector<1x64xf32>
    %49 = vector.multi_reduction <add>, %48, %cst_18 [2] : vector<1x64x64xf32> to vector<1x64xf32>
    %50 = vector.shape_cast %49 : vector<1x64xf32> to vector<1x64x1xf32>
    %51 = tpu.reciprocal %50 {approx = true} : vector<1x64x1xf32> -> vector<1x64x1xf32>
    %52 = arith.truncf %48 : vector<1x64x64xf32> to vector<1x64x64xbf16>
    %cst_19 = arith.constant dense<0.000000e+00> : vector<1x64x16xf32>
    %53 = tpu.matmul %52, %38, %cst_19 {dimension_numbers = #tpu.dot_dimension_numbers<[2], [1], [1], [2], [0, 0, 0, 1, 1, 2], [0], [0]>} : vector<1x64x64xbf16>, vector<1x64x16xbf16>, vector<1x64x16xf32> -> vector<1x64x16xf32>
    %54 = vector.broadcast %51 : vector<1x64x1xf32> to vector<1x64x16xf32>
    %55 = arith.mulf %53, %54 : vector<1x64x16xf32>
    %56 = arith.truncf %55 : vector<1x64x16xf32> to vector<1x64x16xbf16>
    %c0_20 = arith.constant 0 : index
    %c0_21 = arith.constant 0 : index
    %c0_22 = arith.constant 0 : index
    %57 = vector.load %arg9[%c0_20, %c0_21, %c0_22] : memref<1x64x64xbf16, #tpu.memory_space<vmem>>, vector<1x64x16xbf16>
    tpu.vector_store %arg9[%c0_20, %c0_21, %c0_22], %56 {strides = array<i32>} : memref<1x64x64xbf16, #tpu.memory_space<vmem>>, vector<1x64x16xbf16>,
    %58 = vector.extract_strided_slice %31 {offsets = [0, 0, 16], sizes = [1, 64, 16], strides = [1, 1, 1]} : vector<1x64x64xbf16> to vector<1x64x16xbf16>
    %59 = vector.extract_strided_slice %33 {offsets = [0, 0, 16], sizes = [1, 64, 16], strides = [1, 1, 1]} : vector<1x64x64xbf16> to vector<1x64x16xbf16>
    %60 = vector.extract_strided_slice %35 {offsets = [0, 0, 16], sizes = [1, 64, 16], strides = [1, 1, 1]} : vector<1x64x64xbf16> to vector<1x64x16xbf16>
    %cst_23 = arith.constant dense<0.000000e+00> : vector<1x64x64xf32>
    %61 = tpu.matmul %58, %59, %cst_23 {dimension_numbers = #tpu.dot_dimension_numbers<[2], [2], [1], [1], [0, 0, 0, 1, 1, 1], [0], [0]>} : vector<1x64x16xbf16>, vector<1x64x16xbf16>, vector<1x64x64xf32> -> vector<1x64x64xf32>
    %c1 = arith.constant 1 : index
    %c0_24 = arith.constant 0 : index
    %c0_25 = arith.constant 0 : index
    %62 = vector.load %arg7[%c1, %c0_24, %c0_25] : memref<4x64x64xf32, #tpu.memory_space<vmem>>, vector<1x64x64xf32>
    %63 = vector.shape_cast %62 : vector<1x64x64xf32> to vector<64x64xf32>
    %64 = vector.shape_cast %63 : vector<64x64xf32> to vector<1x64x64xf32>
    %65 = arith.addf %61, %64 : vector<1x64x64xf32>
    %cst_26 = arith.constant dense<0xFF800000> : vector<1x64xf32>
    %66 = vector.multi_reduction <maximumf>, %65, %cst_26 [2] : vector<1x64x64xf32> to vector<1x64xf32>
    %67 = vector.shape_cast %66 : vector<1x64xf32> to vector<1x64x1xf32>
    %68 = vector.broadcast %67 : vector<1x64x1xf32> to vector<1x64x64xf32>
    %69 = arith.subf %65, %68 : vector<1x64x64xf32>
    %70 = math.exp %69 : vector<1x64x64xf32>
    %cst_27 = arith.constant dense<0.000000e+00> : vector<1x64xf32>
    %71 = vector.multi_reduction <add>, %70, %cst_27 [2] : vector<1x64x64xf32> to vector<1x64xf32>
    %72 = vector.shape_cast %71 : vector<1x64xf32> to vector<1x64x1xf32>
    %73 = tpu.reciprocal %72 {approx = true} : vector<1x64x1xf32> -> vector<1x64x1xf32>
    %74 = arith.truncf %70 : vector<1x64x64xf32> to vector<1x64x64xbf16>
    %cst_28 = arith.constant dense<0.000000e+00> : vector<1x64x16xf32>
    %75 = tpu.matmul %74, %60, %cst_28 {dimension_numbers = #tpu.dot_dimension_numbers<[2], [1], [1], [2], [0, 0, 0, 1, 1, 2], [0], [0]>} : vector<1x64x64xbf16>, vector<1x64x16xbf16>, vector<1x64x16xf32> -> vector<1x64x16xf32>
    %76 = vector.broadcast %73 : vector<1x64x1xf32> to vector<1x64x16xf32>
    %77 = arith.mulf %75, %76 : vector<1x64x16xf32>
    %78 = arith.truncf %77 : vector<1x64x16xf32> to vector<1x64x16xbf16>
    %c0_29 = arith.constant 0 : index
    %c0_30 = arith.constant 0 : index
    %c16 = arith.constant 16 : index
    %79 = vector.load %arg9[%c0_29, %c0_30, %c16] : memref<1x64x64xbf16, #tpu.memory_space<vmem>>, vector<1x64x16xbf16>
    tpu.vector_store %arg9[%c0_29, %c0_30, %c16], %78 {strides = array<i32>} : memref<1x64x64xbf16, #tpu.memory_space<vmem>>, vector<1x64x16xbf16>,
    %80 = vector.extract_strided_slice %31 {offsets = [0, 0, 32], sizes = [1, 64, 16], strides = [1, 1, 1]} : vector<1x64x64xbf16> to vector<1x64x16xbf16>
    %81 = vector.extract_strided_slice %33 {offsets = [0, 0, 32], sizes = [1, 64, 16], strides = [1, 1, 1]} : vector<1x64x64xbf16> to vector<1x64x16xbf16>
    %82 = vector.extract_strided_slice %35 {offsets = [0, 0, 32], sizes = [1, 64, 16], strides = [1, 1, 1]} : vector<1x64x64xbf16> to vector<1x64x16xbf16>
    %cst_31 = arith.constant dense<0.000000e+00> : vector<1x64x64xf32>
    %83 = tpu.matmul %80, %81, %cst_31 {dimension_numbers = #tpu.dot_dimension_numbers<[2], [2], [1], [1], [0, 0, 0, 1, 1, 1], [0], [0]>} : vector<1x64x16xbf16>, vector<1x64x16xbf16>, vector<1x64x64xf32> -> vector<1x64x64xf32>
    %c2 = arith.constant 2 : index
    %c0_32 = arith.constant 0 : index
    %c0_33 = arith.constant 0 : index
    %84 = vector.load %arg7[%c2, %c0_32, %c0_33] : memref<4x64x64xf32, #tpu.memory_space<vmem>>, vector<1x64x64xf32>
    %85 = vector.shape_cast %84 : vector<1x64x64xf32> to vector<64x64xf32>
    %86 = vector.shape_cast %85 : vector<64x64xf32> to vector<1x64x64xf32>
    %87 = arith.addf %83, %86 : vector<1x64x64xf32>
    %cst_34 = arith.constant dense<0xFF800000> : vector<1x64xf32>
    %88 = vector.multi_reduction <maximumf>, %87, %cst_34 [2] : vector<1x64x64xf32> to vector<1x64xf32>
    %89 = vector.shape_cast %88 : vector<1x64xf32> to vector<1x64x1xf32>
    %90 = vector.broadcast %89 : vector<1x64x1xf32> to vector<1x64x64xf32>
    %91 = arith.subf %87, %90 : vector<1x64x64xf32>
    %92 = math.exp %91 : vector<1x64x64xf32>
    %cst_35 = arith.constant dense<0.000000e+00> : vector<1x64xf32>
    %93 = vector.multi_reduction <add>, %92, %cst_35 [2] : vector<1x64x64xf32> to vector<1x64xf32>
    %94 = vector.shape_cast %93 : vector<1x64xf32> to vector<1x64x1xf32>
    %95 = tpu.reciprocal %94 {approx = true} : vector<1x64x1xf32> -> vector<1x64x1xf32>
    %96 = arith.truncf %92 : vector<1x64x64xf32> to vector<1x64x64xbf16>
    %cst_36 = arith.constant dense<0.000000e+00> : vector<1x64x16xf32>
    %97 = tpu.matmul %96, %82, %cst_36 {dimension_numbers = #tpu.dot_dimension_numbers<[2], [1], [1], [2], [0, 0, 0, 1, 1, 2], [0], [0]>} : vector<1x64x64xbf16>, vector<1x64x16xbf16>, vector<1x64x16xf32> -> vector<1x64x16xf32>
    %98 = vector.broadcast %95 : vector<1x64x1xf32> to vector<1x64x16xf32>
    %99 = arith.mulf %97, %98 : vector<1x64x16xf32>
    %100 = arith.truncf %99 : vector<1x64x16xf32> to vector<1x64x16xbf16>
    %c0_37 = arith.constant 0 : index
    %c0_38 = arith.constant 0 : index
    %c32 = arith.constant 32 : index
    %101 = vector.load %arg9[%c0_37, %c0_38, %c32] : memref<1x64x64xbf16, #tpu.memory_space<vmem>>, vector<1x64x16xbf16>
    tpu.vector_store %arg9[%c0_37, %c0_38, %c32], %100 {strides = array<i32>} : memref<1x64x64xbf16, #tpu.memory_space<vmem>>, vector<1x64x16xbf16>,
    %102 = vector.extract_strided_slice %31 {offsets = [0, 0, 48], sizes = [1, 64, 16], strides = [1, 1, 1]} : vector<1x64x64xbf16> to vector<1x64x16xbf16>
    %103 = vector.extract_strided_slice %33 {offsets = [0, 0, 48], sizes = [1, 64, 16], strides = [1, 1, 1]} : vector<1x64x64xbf16> to vector<1x64x16xbf16>
    %104 = vector.extract_strided_slice %35 {offsets = [0, 0, 48], sizes = [1, 64, 16], strides = [1, 1, 1]} : vector<1x64x64xbf16> to vector<1x64x16xbf16>
    %cst_39 = arith.constant dense<0.000000e+00> : vector<1x64x64xf32>
    %105 = tpu.matmul %102, %103, %cst_39 {dimension_numbers = #tpu.dot_dimension_numbers<[2], [2], [1], [1], [0, 0, 0, 1, 1, 1], [0], [0]>} : vector<1x64x16xbf16>, vector<1x64x16xbf16>, vector<1x64x64xf32> -> vector<1x64x64xf32>
    %c3 = arith.constant 3 : index
    %c0_40 = arith.constant 0 : index
    %c0_41 = arith.constant 0 : index
    %106 = vector.load %arg7[%c3, %c0_40, %c0_41] : memref<4x64x64xf32, #tpu.memory_space<vmem>>, vector<1x64x64xf32>
    %107 = vector.shape_cast %106 : vector<1x64x64xf32> to vector<64x64xf32>
    %108 = vector.shape_cast %107 : vector<64x64xf32> to vector<1x64x64xf32>
    %109 = arith.addf %105, %108 : vector<1x64x64xf32>
    %cst_42 = arith.constant dense<0xFF800000> : vector<1x64xf32>
    %110 = vector.multi_reduction <maximumf>, %109, %cst_42 [2] : vector<1x64x64xf32> to vector<1x64xf32>
    %111 = vector.shape_cast %110 : vector<1x64xf32> to vector<1x64x1xf32>
    %112 = vector.broadcast %111 : vector<1x64x1xf32> to vector<1x64x64xf32>
    %113 = arith.subf %109, %112 : vector<1x64x64xf32>
    %114 = math.exp %113 : vector<1x64x64xf32>
    %cst_43 = arith.constant dense<0.000000e+00> : vector<1x64xf32>
    %115 = vector.multi_reduction <add>, %114, %cst_43 [2] : vector<1x64x64xf32> to vector<1x64xf32>
    %116 = vector.shape_cast %115 : vector<1x64xf32> to vector<1x64x1xf32>
    %117 = tpu.reciprocal %116 {approx = true} : vector<1x64x1xf32> -> vector<1x64x1xf32>
    %118 = arith.truncf %114 : vector<1x64x64xf32> to vector<1x64x64xbf16>
    %cst_44 = arith.constant dense<0.000000e+00> : vector<1x64x16xf32>
    %119 = tpu.matmul %118, %104, %cst_44 {dimension_numbers = #tpu.dot_dimension_numbers<[2], [1], [1], [2], [0, 0, 0, 1, 1, 2], [0], [0]>} : vector<1x64x64xbf16>, vector<1x64x16xbf16>, vector<1x64x16xf32> -> vector<1x64x16xf32>
    %120 = vector.broadcast %117 : vector<1x64x1xf32> to vector<1x64x16xf32>
    %121 = arith.mulf %119, %120 : vector<1x64x16xf32>
    %122 = arith.truncf %121 : vector<1x64x16xf32> to vector<1x64x16xbf16>
    %c0_45 = arith.constant 0 : index
    %c0_46 = arith.constant 0 : index
    %c48 = arith.constant 48 : index
    %123 = vector.load %arg9[%c0_45, %c0_46, %c48] : memref<1x64x64xbf16, #tpu.memory_space<vmem>>, vector<1x64x16xbf16>
    tpu.vector_store %arg9[%c0_45, %c0_46, %c48], %122 {strides = array<i32>} : memref<1x64x64xbf16, #tpu.memory_space<vmem>>, vector<1x64x16xbf16>,
    %c0_47 = arith.constant 0 : index
    %c0_48 = arith.constant 0 : index
    %c0_49 = arith.constant 0 : index
    %124 = vector.load %arg9[%c0_47, %c0_48, %c0_49] : memref<1x64x64xbf16, #tpu.memory_space<vmem>>, vector<1x64x64xbf16>
    %125 = vector.shape_cast %124 : vector<1x64x64xbf16> to vector<64x64xbf16>
    %c0_50 = arith.constant 0 : index
    %c0_51 = arith.constant 0 : index
    %126 = vector.load %arg5[%c0_50, %c0_51] : memref<64x128xbf16, #tpu.memory_space<vmem>>, vector<64x128xbf16>
    %cst_52 = arith.constant dense<0.000000e+00> : vector<64x128xf32>
    %127 = tpu.matmul %125, %126, %cst_52 {dimension_numbers = #tpu.dot_dimension_numbers<[1], [0], [0], [1], [0, 0, 1, 1], [], []>} : vector<64x64xbf16>, vector<64x128xbf16>, vector<64x128xf32> -> vector<64x128xf32>
    %c0_53 = arith.constant 0 : index
    %c0_54 = arith.constant 0 : index
    %128 = vector.load %arg6[%c0_53, %c0_54] : memref<1x128xf32, #tpu.memory_space<vmem>>, vector<1x128xf32>
    %129 = vector.broadcast %128 : vector<1x128xf32> to vector<64x128xf32>
    %130 = arith.addf %127, %129 : vector<64x128xf32>
    %131 = vector.shape_cast %130 : vector<64x128xf32> to vector<1x64x128xf32>
    %c0_55 = arith.constant 0 : index
    %c0_56 = arith.constant 0 : index
    %c0_57 = arith.constant 0 : index
    %132 = vector.load %arg8[%c0_55, %c0_56, %c0_57] : memref<1x64x128xf32, #tpu.memory_space<vmem>>, vector<1x64x128xf32>
    tpu.vector_store %arg8[%c0_55, %c0_56, %c0_57], %131 {strides = array<i32>} : memref<1x64x128xf32, #tpu.memory_space<vmem>>, vector<1x64x128xf32>,
    return
  }
  func.func @transform_0(%arg0: i32) -> (i32, i32, i32) {
    %c0_i32 = arith.constant 0 : i32
    %c0_i32_0 = arith.constant 0 : i32
    %c0_i32_1 = arith.constant 0 : i32
    return %arg0, %c0_i32, %c0_i32_0 : i32, i32, i32
  }
  func.func @transform_1(%arg0: i32) -> (i32, i32) {
    %c0_i32 = arith.constant 0 : i32
    %c0_i32_0 = arith.constant 0 : i32
    %c0_i32_1 = arith.constant 0 : i32
    return %c0_i32, %c0_i32_0 : i32, i32
  }
  func.func @transform_2(%arg0: i32) -> (i32, i32) {
    %c0_i32 = arith.constant 0 : i32
    %c0_i32_0 = arith.constant 0 : i32
    %c0_i32_1 = arith.constant 0 : i32
    return %c0_i32, %c0_i32_0 : i32, i32
  }
  func.func @transform_3(%arg0: i32) -> (i32, i32) {
    %c0_i32 = arith.constant 0 : i32
    %c0_i32_0 = arith.constant 0 : i32
    %c0_i32_1 = arith.constant 0 : i32
    return %c0_i32, %c0_i32_0 : i32, i32
  }
  func.func @transform_4(%arg0: i32) -> (i32, i32) {
    %c0_i32 = arith.constant 0 : i32
    %c0_i32_0 = arith.constant 0 : i32
    %c0_i32_1 = arith.constant 0 : i32
    return %c0_i32, %c0_i32_0 : i32, i32
  }
  func.func @transform_5(%arg0: i32) -> (i32, i32) {
    %c0_i32 = arith.constant 0 : i32
    %c0_i32_0 = arith.constant 0 : i32
    %c0_i32_1 = arith.constant 0 : i32
    return %c0_i32, %c0_i32_0 : i32, i32
  }
  func.func @transform_6(%arg0: i32) -> (i32, i32, i32) {
    %c0_i32 = arith.constant 0 : i32
    %c0_i32_0 = arith.constant 0 : i32
    %c0_i32_1 = arith.constant 0 : i32
    %c0_i32_2 = arith.constant 0 : i32
    return %c0_i32, %c0_i32_0, %c0_i32_1 : i32, i32, i32
  }
  func.func @transform_7(%arg0: i32) -> (i32, i32, i32) {
    %c0_i32 = arith.constant 0 : i32
    %c0_i32_0 = arith.constant 0 : i32
    %c0_i32_1 = arith.constant 0 : i32
    return %arg0, %c0_i32, %c0_i32_0 : i32, i32, i32
  }
}

</mosaic_0001>

<llo_original>
// kernel: tpu_custom_call.1
$region0: #{tpu_custom_call.1}
  #allocation0 [shape = 'u32[]', space=smem, size = 0x4, offset = 0x4, fixed_abs, tag = 'smem constant byte address 0x4 - core index']
  #allocation1 [shape = 'u32[144,128]{1,0:T(1,128)}', space=vmem, size = 0x12000, scoped, tag = 'internal scratch']
  #allocation2 [shape = 'bf16[1,64,64]{2,1,0:T(8,128)(2,1)}', space=vmem, size = 0x4000, scoped, tag = 'scratch operand']
  %s0 = inlined_call_operand.vmem [shape: f32[2,64,32], index: 0, kind: input, shape index: {}]
  %s1 = inlined_call_operand.vmem [shape: f32[1,32], index: 1, kind: input, shape index: {}]
  %s2 = inlined_call_operand.vmem [shape: f32[1,32], index: 2, kind: input, shape index: {}]
  %s3 = inlined_call_operand.vmem [shape: bf16[32,192], index: 3, kind: input, shape index: {}]
  %s4 = inlined_call_operand.vmem [shape: bf16[64,128], index: 4, kind: input, shape index: {}]
  %s5 = inlined_call_operand.vmem [shape: f32[1,128], index: 5, kind: input, shape index: {}]
  %s6 = inlined_call_operand.hbm [shape: f32[4,64,64], index: 6, kind: input, shape index: {}]
  %s7 = inlined_call_operand.hbm [shape: f32[2,64,128], index: 7, kind: output, shape index: {}]
  %s8 = sld [smem:[#allocation0]]
  $region65: #{tpu_custom_call.1} parent=0
    _
  %s10 = ssub.s32 1, %s8
  %s11 = scalar_select 0, %s10, %s8
  $region1: #{tpu_custom_call.1} parent=0
    #allocation3 [shape = 'u8[131072]{0}', space=vmem, size = 0x20000, scoped, tag = 'input window, operand 6, single buffered']
    #allocation4 [shape = 's32[2]{0}', space=sflag, size = 0x8, scoped, tag = 'scoped memory for tpu_custom_call.1']
    #allocation5 [shape = 's32[2]{0}', space=sflag, size = 0x8, scoped, tag = 'scoped memory for tpu_custom_call.1']
    #allocation6 [shape = 'u8[65536]{0}', space=vmem, size = 0x10000, scoped, tag = 'output window, operand 0']
    %12 = vsyncpa [#allocation4], 0
    %13 = vsyncpa [#allocation5], 0
    %s14 = scalar_lea.sflag [#allocation5], 1
    %15 = vsyncpa %s14, 0
    loop: start=0, step=1, limit=4
    $region2: #{tpu_custom_call.1} parent=1 // loop_pre_header
      _
    $region3: #{tpu_custom_call.1} parent=1 // loop_header
      %s17 = sphi 0, %s21
      %p18 = scmp.ge.s32.totalorder %s17, 4
      %s27 = sphi 0, %s29
      %s30 = sphi 0, %s27
      %s31 = sphi 0, %s30
      %s47 = sphi 0, %s31
      %s51 = sphi 0, %s51
      %s53 = sphi 0, %s51
      %s54 = sphi 0, %s53
      %s68 = sphi 0, %s54
      %s72 = sphi 0, %s72
      %s74 = sphi 0, %s72
      %s75 = sphi 0, %s74
      %s89 = sphi 0, %s75
      %s93 = sphi 0, %s93
      %s95 = sphi 0, %s93
      %s96 = sphi 0, %s95
      %s110 = sphi 0, %s96
      %s114 = sphi 0, %s114
      %s116 = sphi 0, %s114
      %s117 = sphi 0, %s116
      %s131 = sphi 0, %s117
      %s135 = sphi 0, %s135
      %s137 = sphi 0, %s135
      %s138 = sphi 0, %s137
      %s152 = sphi 0, %s138
      %s156 = sphi 0, %s156
      %s158 = sphi 0, %s156
      %s159 = sphi 0, %s158
      %s173 = sphi 0, %s159
      %s179 = sphi 0, %s181
      %s182 = sphi 0, %s179
      %s183 = sphi 0, %s182
      %s199 = sphi 0, %s183
    $region4: #{tpu_custom_call.1} parent=1 // loop_header_branch
      %20 = sbr.rel (%p18) target = $region8
    $region5: #{tpu_custom_call.1} parent=1 // loop_body
      %s22 = ssub.s32 %s17, 1
      %s23 = ssub.s32 %s17, 2
      %s24 = sadd.s32 %s17, 1
      %s25 = ssub.s32 %s17, %s24
      %p26 = scmp.eq.s32.totalorder %s25, 0
      %s28 = sadd.s32 %s27, 1
      %s29 = scalar_select %p26, %s27, %s28
      %p32 = pneg %p26
      %p33 = scmp.eq.s32.totalorder %s17, 1
      %p34 = por %p32, %p33
      %p35 = scmp.ne.s32.totalorder %s27, %s30
      %p36 = scmp.eq.s32.totalorder %s17, 0
      %p37 = por %p35, %p36
      %p38 = scmp.ne.s32.totalorder %s27, %s30
      %p39 = scmp.eq.s32.totalorder %s22, 1
      %p40 = por %p38, %p39
      %p41 = scmp.ne.s32.totalorder %s30, %s31
      %p42 = scmp.eq.s32.totalorder %s22, 0
      %p43 = por %p41, %p42
      %p44 = scmp.ne.s32.totalorder %s30, %s31
      %p45 = scmp.eq.s32.totalorder %s23, 1
      %p46 = por %p44, %p45
      %p48 = scmp.ne.s32.totalorder %s31, %s47
      %p49 = scmp.eq.s32.totalorder %s23, 0
      %p50 = por %p48, %p49
      %s52 = sadd.s32 %s51, 1
      %p55 = scmp.eq.s32.totalorder %s17, 1
      %p56 = scmp.ne.s32.totalorder %s51, %s53
      %p57 = scmp.eq.s32.totalorder %s17, 0
      %p58 = por %p56, %p57
      %p59 = scmp.ne.s32.totalorder %s51, %s53
      %p60 = scmp.eq.s32.totalorder %s22, 1
      %p61 = por %p59, %p60
      %p62 = scmp.ne.s32.totalorder %s53, %s54
      %p63 = scmp.eq.s32.totalorder %s22, 0
      %p64 = por %p62, %p63
      %p65 = scmp.ne.s32.totalorder %s53, %s54
      %p66 = scmp.eq.s32.totalorder %s23, 1
      %p67 = por %p65, %p66
      %p69 = scmp.ne.s32.totalorder %s54, %s68
      %p70 = scmp.eq.s32.totalorder %s23, 0
      %p71 = por %p69, %p70
      %s73 = sadd.s32 %s72, 1
      %p76 = scmp.eq.s32.totalorder %s17, 1
      %p77 = scmp.ne.s32.totalorder %s72, %s74
      %p78 = scmp.eq.s32.totalorder %s17, 0
      %p79 = por %p77, %p78
      %p80 = scmp.ne.s32.totalorder %s72, %s74
      %p81 = scmp.eq.s32.totalorder %s22, 1
      %p82 = por %p80, %p81
      %p83 = scmp.ne.s32.totalorder %s74, %s75
      %p84 = scmp.eq.s32.totalorder %s22, 0
      %p85 = por %p83, %p84
      %p86 = scmp.ne.s32.totalorder %s74, %s75
      %p87 = scmp.eq.s32.totalorder %s23, 1
      %p88 = por %p86, %p87
      %p90 = scmp.ne.s32.totalorder %s75, %s89
      %p91 = scmp.eq.s32.totalorder %s23, 0
      %p92 = por %p90, %p91
      %s94 = sadd.s32 %s93, 1
      %p97 = scmp.eq.s32.totalorder %s17, 1
      %p98 = scmp.ne.s32.totalorder %s93, %s95
      %p99 = scmp.eq.s32.totalorder %s17, 0
      %p100 = por %p98, %p99
      %p101 = scmp.ne.s32.totalorder %s93, %s95
      %p102 = scmp.eq.s32.totalorder %s22, 1
      %p103 = por %p101, %p102
      %p104 = scmp.ne.s32.totalorder %s95, %s96
      %p105 = scmp.eq.s32.totalorder %s22, 0
      %p106 = por %p104, %p105
      %p107 = scmp.ne.s32.totalorder %s95, %s96
      %p108 = scmp.eq.s32.totalorder %s23, 1
      %p109 = por %p107, %p108
      %p111 = scmp.ne.s32.totalorder %s96, %s110
      %p112 = scmp.eq.s32.totalorder %s23, 0
      %p113 = por %p111, %p112
      %s115 = sadd.s32 %s114, 1
      %p118 = scmp.eq.s32.totalorder %s17, 1
      %p119 = scmp.ne.s32.totalorder %s114, %s116
      %p120 = scmp.eq.s32.totalorder %s17, 0
      %p121 = por %p119, %p120
      %p122 = scmp.ne.s32.totalorder %s114, %s116
      %p123 = scmp.eq.s32.totalorder %s22, 1
      %p124 = por %p122, %p123
      %p125 = scmp.ne.s32.totalorder %s116, %s117
      %p126 = scmp.eq.s32.totalorder %s22, 0
      %p127 = por %p125, %p126
      %p128 = scmp.ne.s32.totalorder %s116, %s117
      %p129 = scmp.eq.s32.totalorder %s23, 1
      %p130 = por %p128, %p129
      %p132 = scmp.ne.s32.totalorder %s117, %s131
      %p133 = scmp.eq.s32.totalorder %s23, 0
      %p134 = por %p132, %p133
      %s136 = sadd.s32 %s135, 1
      %p139 = scmp.eq.s32.totalorder %s17, 1
      %p140 = scmp.ne.s32.totalorder %s135, %s137
      %p141 = scmp.eq.s32.totalorder %s17, 0
      %p142 = por %p140, %p141
      %p143 = scmp.ne.s32.totalorder %s135, %s137
      %p144 = scmp.eq.s32.totalorder %s22, 1
      %p145 = por %p143, %p144
      %p146 = scmp.ne.s32.totalorder %s137, %s138
      %p147 = scmp.eq.s32.totalorder %s22, 0
      %p148 = por %p146, %p147
      %p149 = scmp.ne.s32.totalorder %s137, %s138
      %p150 = scmp.eq.s32.totalorder %s23, 1
      %p151 = por %p149, %p150
      %p153 = scmp.ne.s32.totalorder %s138, %s152
      %p154 = scmp.eq.s32.totalorder %s23, 0
      %p155 = por %p153, %p154
      %s157 = sadd.s32 %s156, 1
      %p160 = scmp.eq.s32.totalorder %s17, 1
      %p161 = scmp.ne.s32.totalorder %s156, %s158
      %p162 = scmp.eq.s32.totalorder %s17, 0
      %p163 = por %p161, %p162
      %p164 = scmp.ne.s32.totalorder %s156, %s158
      %p165 = scmp.eq.s32.totalorder %s22, 1
      %p166 = por %p164, %p165
      %p167 = scmp.ne.s32.totalorder %s158, %s159
      %p168 = scmp.eq.s32.totalorder %s22, 0
      %p169 = por %p167, %p168
      %p170 = scmp.ne.s32.totalorder %s158, %s159
      %p171 = scmp.eq.s32.totalorder %s23, 1
      %p172 = por %p170, %p171
      %p174 = scmp.ne.s32.totalorder %s159, %s173
      %p175 = scmp.eq.s32.totalorder %s23, 0
      %p176 = por %p174, %p175
      %s177 = ssub.s32 %s17, %s24
      %p178 = scmp.eq.s32.totalorder %s177, 0
      %s180 = sadd.s32 %s179, 1
      %s181 = scalar_select %p178, %s179, %s180
      %p184 = pneg %p178
      %p185 = scmp.eq.s32.totalorder %s17, 1
      %p186 = por %p184, %p185
      %p187 = scmp.ne.s32.totalorder %s179, %s182
      %p188 = scmp.eq.s32.totalorder %s17, 0
      %p189 = por %p187, %p188
      %p190 = scmp.ne.s32.totalorder %s179, %s182
      %p191 = scmp.eq.s32.totalorder %s22, 1
      %p192 = por %p190, %p191
      %p193 = scmp.ne.s32.totalorder %s182, %s183
      %p194 = scmp.eq.s32.totalorder %s22, 0
      %p195 = por %p193, %p194
      %p196 = scmp.ne.s32.totalorder %s182, %s183
      %p197 = scmp.eq.s32.totalorder %s23, 1
      %p198 = por %p196, %p197
      %p200 = scmp.ne.s32.totalorder %s183, %s199
      %p201 = scmp.eq.s32.totalorder %s23, 0
      %p202 = por %p200, %p201
      %p203 = scmp.le.s32.totalorder 1, %s17
      %p204 = scmp.lt.s32.totalorder %s17, 3
      %p205 = pnand %p203, %p204
      %p206 = pneg %p205
      // Predicated region
      $region9: #{tpu_custom_call.1} parent=5 // pred_check
        _
      $region10: #{tpu_custom_call.1} parent=5 // pred_check_branch
        %208 = sbr.rel (%p205) target = $region12
      $region11: #{tpu_custom_call.1} parent=5 // pred_region
        %s209 = ssub.s32 %s17, 1
        // Predicated region
        $region13: #{tpu_custom_call.1} parent=11 // pred_check
          %p210 = pneg %p64
        $region14: #{tpu_custom_call.1} parent=11 // pred_check_branch
          %212 = sbr.rel (%p210) target = $region16
        $region15: #{tpu_custom_call.1} parent=11 // pred_region
          _
        $region16: #{tpu_custom_call.1} parent=11 // pred_fallthru
          _
        // Predicated region
        $region17: #{tpu_custom_call.1} parent=11 // pred_check
          %p213 = pneg %p85
        $region18: #{tpu_custom_call.1} parent=11 // pred_check_branch
          %215 = sbr.rel (%p213) target = $region20
        $region19: #{tpu_custom_call.1} parent=11 // pred_region
          _
        $region20: #{tpu_custom_call.1} parent=11 // pred_fallthru
          _
        // Predicated region
        $region21: #{tpu_custom_call.1} parent=11 // pred_check
          %p216 = pneg %p106
        $region22: #{tpu_custom_call.1} parent=11 // pred_check_branch
          %218 = sbr.rel (%p216) target = $region24
        $region23: #{tpu_custom_call.1} parent=11 // pred_region
          _
        $region24: #{tpu_custom_call.1} parent=11 // pred_fallthru
          _
        // Predicated region
        $region25: #{tpu_custom_call.1} parent=11 // pred_check
          %p219 = pneg %p127
        $region26: #{tpu_custom_call.1} parent=11 // pred_check_branch
          %221 = sbr.rel (%p219) target = $region28
        $region27: #{tpu_custom_call.1} parent=11 // pred_region
          _
        $region28: #{tpu_custom_call.1} parent=11 // pred_fallthru
          _
        // Predicated region
        $region29: #{tpu_custom_call.1} parent=11 // pred_check
          %p222 = pneg %p148
        $region30: #{tpu_custom_call.1} parent=11 // pred_check_branch
          %224 = sbr.rel (%p222) target = $region32
        $region31: #{tpu_custom_call.1} parent=11 // pred_region
          _
        $region32: #{tpu_custom_call.1} parent=11 // pred_fallthru
          _
        // Predicated region
        $region33: #{tpu_custom_call.1} parent=11 // pred_check
          %p225 = pneg %p169
        $region34: #{tpu_custom_call.1} parent=11 // pred_check_branch
          %227 = sbr.rel (%p225) target = $region36
        $region35: #{tpu_custom_call.1} parent=11 // pred_region
          %s229 = ssub.s32 4096, 4096
          %230 = vsyncadd [#allocation4], %s229
          %s231 = sshll.u32 [#allocation3], 4
          %s232 = int_to_ptr.vmem [resolvable:$true] %s231
          %237 = dma.hbm_to_vmem [thread:$0]  %s6, 4096, %s232, [#allocation4], 128, 128, 8
        $region36: #{tpu_custom_call.1} parent=11 // pred_fallthru
          _
      $region12: #{tpu_custom_call.1} parent=5 // pred_fallthru
        _
      %p238 = scmp.lt.s32.totalorder %s17, 2
      // Predicated region
      $region37: #{tpu_custom_call.1} parent=5 // pred_check
        %p239 = pneg %p238
      $region38: #{tpu_custom_call.1} parent=5 // pred_check_branch
        %241 = sbr.rel (%p239) target = $region40
      $region39: #{tpu_custom_call.1} parent=5 // pred_region
        // Predicated region
        $region41: #{tpu_custom_call.1} parent=39 // pred_check
          %p242 = pneg %p37
        $region42: #{tpu_custom_call.1} parent=39 // pred_check_branch
          %244 = sbr.rel (%p242) target = $region44
        $region43: #{tpu_custom_call.1} parent=39 // pred_region
          %p245 = scmp.lt.s32.totalorder %s17, 1
          %s246 = scalar_select %p245, %s17, 1
          %s247 = smul.addr %s246, 8
          %s248 = smul.addr %s247, 8
          %s249 = scalar_lea.vmem %s0, %s248
        $region44: #{tpu_custom_call.1} parent=39 // pred_fallthru
          _
      $region40: #{tpu_custom_call.1} parent=5 // pred_fallthru
        _
      %p250 = scmp.le.s32.totalorder 1, %s17
      %p251 = scmp.lt.s32.totalorder %s17, 3
      %p252 = pnand %p250, %p251
      %p253 = pneg %p252
      // Predicated region
      $region45: #{tpu_custom_call.1} parent=5 // pred_check
        _
      $region46: #{tpu_custom_call.1} parent=5 // pred_check_branch
        %255 = sbr.rel (%p252) target = $region48
      $region47: #{tpu_custom_call.1} parent=5 // pred_region
        %s256 = ssub.s32 %s17, 1
        // Predicated region
        $region49: #{tpu_custom_call.1} parent=47 // pred_check
          %p257 = pneg %p169
        $region50: #{tpu_custom_call.1} parent=47 // pred_check_branch
          %259 = sbr.rel (%p257) target = $region52
        $region51: #{tpu_custom_call.1} parent=47 // pred_region
          %260 = dma.done [#allocation4], 4096
        $region52: #{tpu_custom_call.1} parent=47 // pred_fallthru
          _
        %p261 = scmp.lt.s32.totalorder %s22, 1
        %s262 = scalar_select %p261, %s22, 1
        %s263 = smul.addr %s262, 8
        %s264 = smul.addr %s263, 8
        %s265 = scalar_lea.vmem %s0, %s264
        %p266 = pneg %p43
        %p267 = pneg %p40
        %p268 = pneg %p64
        %p269 = pneg %p61
        %p270 = pneg %p85
        %p271 = pneg %p82
        %p272 = pneg %p106
        %p273 = pneg %p103
        %p274 = pneg %p127
        %p275 = pneg %p124
        %p276 = pneg %p148
        %p277 = pneg %p145
        %p278 = pneg %p169
        %p279 = pneg %p166
        %p280 = pneg %p195
        %p281 = pneg %p192
        %s282 = sand.u32 %s182, 1
        %s283 = scalar_lea.sflag [#allocation5], %s282
        %s284 = sand.u32 %s182, 1
        %s285 = smul.addr %s284, 64
        %s286 = scalar_lea.vmem [#allocation6], %s285
        %p287 = scmp.lt.s32.totalorder %s22, 1
        %s288 = scalar_select %p287, %s22, 1
        %s289 = smul.addr %s288, 8
        %s290 = smul.addr %s289, 8
        %s291 = scalar_lea.vmem %s0, %s290
        %v293 = vld [vmem:[%s291] sm:$0xff]
        %v294 = vld [vmem:[%s291 + $0x8] sm:$0xff]
        %v295 = vld [vmem:[%s291 + $0x10] sm:$0xff]
        %v296 = vld [vmem:[%s291 + $0x18] sm:$0xff]
        %v297 = vld [vmem:[%s291 + $0x20] sm:$0xff]
        %v298 = vld [vmem:[%s291 + $0x28] sm:$0xff]
        %v299 = vld [vmem:[%s291 + $0x30] sm:$0xff]
        %v300 = vld [vmem:[%s291 + $0x38] sm:$0xff]
        %vm301 = vcmask 261120
        %v302 = vsel %vm301, %v293, 0.0
        %303 = vadd.xlane.f32.xlu0 %v302
        %v304 = vpop.xlane.xlu0 %303
        %v305 = vsel %vm301, %v294, 0.0
        %306 = vadd.xlane.f32.xlu0 %v305
        %v307 = vpop.xlane.xlu0 %306
        %v308 = vsel %vm301, %v295, 0.0
        %309 = vadd.xlane.f32.xlu0 %v308
        %v310 = vpop.xlane.xlu0 %309
        %v311 = vsel %vm301, %v296, 0.0
        %312 = vadd.xlane.f32.xlu0 %v311
        %v313 = vpop.xlane.xlu0 %312
        %v314 = vsel %vm301, %v297, 0.0
        %315 = vadd.xlane.f32.xlu0 %v314
        %v316 = vpop.xlane.xlu0 %315
        %v317 = vsel %vm301, %v298, 0.0
        %318 = vadd.xlane.f32.xlu0 %v317
        %v319 = vpop.xlane.xlu0 %318
        %v320 = vsel %vm301, %v299, 0.0
        %321 = vadd.xlane.f32.xlu0 %v320
        %v322 = vpop.xlane.xlu0 %321
        %v323 = vsel %vm301, %v300, 0.0
        %324 = vadd.xlane.f32.xlu0 %v323
        %v325 = vpop.xlane.xlu0 %324
        %v326 = vrcp.pop 32.0
        %v327 = vmul.f32 %v304, %v326
        %v328 = vmul.f32 %v307, %v326
        %v329 = vmul.f32 %v310, %v326
        %v330 = vmul.f32 %v313, %v326
        %v331 = vmul.f32 %v316, %v326
        %v332 = vmul.f32 %v319, %v326
        %v333 = vmul.f32 %v322, %v326
        %v334 = vmul.f32 %v325, %v326
        %v335 = vsub.f32 %v293, %v327
        %v336 = vsub.f32 %v294, %v328
        %v337 = vsub.f32 %v295, %v329
        %v338 = vsub.f32 %v296, %v330
        %v339 = vsub.f32 %v297, %v331
        %v340 = vsub.f32 %v298, %v332
        %v341 = vsub.f32 %v299, %v333
        %v342 = vsub.f32 %v300, %v334
        %v343 = vmul.f32 %v335, %v335
        %v344 = vmul.f32 %v336, %v336
        %v345 = vmul.f32 %v337, %v337
        %v346 = vmul.f32 %v338, %v338
        %v347 = vmul.f32 %v339, %v339
        %v348 = vmul.f32 %v340, %v340
        %v349 = vmul.f32 %v341, %v341
        %v350 = vmul.f32 %v342, %v342
        %v351 = vsel %vm301, %v343, 0.0
        %352 = vadd.xlane.f32.xlu0 %v351
        %v353 = vpop.xlane.xlu0 %352
        %v354 = vsel %vm301, %v344, 0.0
        %355 = vadd.xlane.f32.xlu0 %v354
        %v356 = vpop.xlane.xlu0 %355
        %v357 = vsel %vm301, %v345, 0.0
        %358 = vadd.xlane.f32.xlu0 %v357
        %v359 = vpop.xlane.xlu0 %358
        %v360 = vsel %vm301, %v346, 0.0
        %361 = vadd.xlane.f32.xlu0 %v360
        %v362 = vpop.xlane.xlu0 %361
        %v363 = vsel %vm301, %v347, 0.0
        %364 = vadd.xlane.f32.xlu0 %v363
        %v365 = vpop.xlane.xlu0 %364
        %v366 = vsel %vm301, %v348, 0.0
        %367 = vadd.xlane.f32.xlu0 %v366
        %v368 = vpop.xlane.xlu0 %367
        %v369 = vsel %vm301, %v349, 0.0
        %370 = vadd.xlane.f32.xlu0 %v369
        %v371 = vpop.xlane.xlu0 %370
        %v372 = vsel %vm301, %v350, 0.0
        %373 = vadd.xlane.f32.xlu0 %v372
        %v374 = vpop.xlane.xlu0 %373
        %v375 = vmul.f32 %v353, %v326
        %v376 = vmul.f32 %v356, %v326
        %v377 = vmul.f32 %v359, %v326
        %v378 = vmul.f32 %v362, %v326
        %v379 = vmul.f32 %v365, %v326
        %v380 = vmul.f32 %v368, %v326
        %v381 = vmul.f32 %v371, %v326
        %v382 = vmul.f32 %v374, %v326
        %v383 = vadd.f32 %v375, 1e-05
        %v384 = vadd.f32 %v376, 1e-05
        %v385 = vadd.f32 %v377, 1e-05
        %v386 = vadd.f32 %v378, 1e-05
        %v387 = vadd.f32 %v379, 1e-05
        %v388 = vadd.f32 %v380, 1e-05
        %v389 = vadd.f32 %v381, 1e-05
        %v390 = vadd.f32 %v382, 1e-05
        %v391 = vrsqrt.pop %v383
        %v392 = vrsqrt.pop %v384
        %v393 = vrsqrt.pop %v385
        %v394 = vrsqrt.pop %v386
        %v395 = vrsqrt.pop %v387
        %v396 = vrsqrt.pop %v388
        %v397 = vrsqrt.pop %v389
        %v398 = vrsqrt.pop %v390
        %v399 = vmul.f32 %v335, %v391
        %v400 = vmul.f32 %v336, %v392
        %v401 = vmul.f32 %v337, %v393
        %v402 = vmul.f32 %v338, %v394
        %v403 = vmul.f32 %v339, %v395
        %v404 = vmul.f32 %v340, %v396
        %v405 = vmul.f32 %v341, %v397
        %v406 = vmul.f32 %v342, %v398
        %v407 = vld [vmem:[%s1] sm:$0x1]
        %v409 = vlaneseq
        %v410 = vshrl.u32 %v409, 7
        %v411 = vsub.s32 0, %v410
        %v412 = vrot.slane %v407, %v411
        %v414 = vmul.f32 %v399, %v412
        %v415 = vmul.f32 %v400, %v412
        %v416 = vmul.f32 %v401, %v412
        %v417 = vmul.f32 %v402, %v412
        %v418 = vmul.f32 %v403, %v412
        %v419 = vmul.f32 %v404, %v412
        %v420 = vmul.f32 %v405, %v412
        %v421 = vmul.f32 %v406, %v412
        %v422 = vld [vmem:[%s2] sm:$0x1]
        %v424 = vlaneseq
        %v425 = vshrl.u32 %v424, 7
        %v426 = vsub.s32 0, %v425
        %v427 = vrot.slane %v422, %v426
        %v429 = vadd.f32 %v414, %v427
        %v430 = vadd.f32 %v415, %v427
        %v431 = vadd.f32 %v416, %v427
        %v432 = vadd.f32 %v417, %v427
        %v433 = vadd.f32 %v418, %v427
        %v434 = vadd.f32 %v419, %v427
        %v435 = vadd.f32 %v420, %v427
        %v436 = vadd.f32 %v421, %v427
        %v437 = vpack.c.bf16 %v430, %v429
        %v438 = vpack.c.bf16 %v432, %v431
        %v439 = vpack.c.bf16 %v434, %v433
        %v440 = vpack.c.bf16 %v436, %v435
        %v441 = vld [vmem:[%s3] sm:$0xff]
        %v442 = vld [vmem:[%s3 + $0x8] sm:$0xff]
        %v443 = vld [vmem:[%s3 + $0x10] sm:$0xff]
        %v444 = vld [vmem:[%s3 + $0x18] sm:$0xff]
        %v449 = vunpack.c.l.b16 %v441
        %v450 = vunpack.c.h.b16 %v441
        %v451 = vunpack.c.l.b16 %v442
        %v452 = vunpack.c.h.b16 %v442
        %v453 = vunpack.c.l.b16 %v443
        %v454 = vunpack.c.h.b16 %v443
        %v455 = vunpack.c.l.b16 %v444
        %v456 = vunpack.c.h.b16 %v444
        %v457 = vpack.c.b16 %v451, %v449
        %v458 = vpack.c.b16 %v452, %v450
        %v459 = vpack.c.b16 %v455, %v453
        %v460 = vpack.c.b16 %v456, %v454
        %v466 = vsel %vm301, %v437, 0
        %v469 = vsel %vm301, %v438, 0
        %v472 = vsel %vm301, %v439, 0
        %v475 = vsel %vm301, %v440, 0
        %477 = vmatprep.subr.bf16.mxu0 0
        %478 = vmatpush1.bf16.msra.mxu0 0
        %479 = vmatprep.subr.bf16.mxu0 0
        %480 = vmatpush1.bf16.msra.mxu0 0
        %481 = vmatprep.subr.bf16.mxu0 0
        %482 = vmatpush1.bf16.msra.mxu0 0
        %483 = vmatprep.subr.bf16.mxu0 0
        %484 = vmatpush1.bf16.msra.mxu0 0
        %485 = vmatprep.subr.bf16.mxu0 0
        %486 = vmatpush1.bf16.msra.mxu0 0
        %487 = vmatprep.subr.bf16.mxu0 0
        %488 = vmatpush1.bf16.msra.mxu0 0
        %489 = vmatprep.subr.bf16.mxu0 %v460
        %490 = vmatpush1.bf16.msra.mxu0 %v459
        %491 = vmatprep.subr.bf16.mxu0 %v458
        %492 = vmatpush1.bf16.msra.mxu0 %v457
        %493 = vmatprep.subr.bf16.mxu0 0
        %494 = vmatpush2.bf16.msra.mxu0 0
        %495 = vmatprep.subr.bf16.mxu0 0
        %496 = vmatpush2.bf16.msra.mxu0 0
        %497 = vmatprep.subr.bf16.mxu0 0
        %498 = vmatpush2.bf16.msra.mxu0 0
        %499 = vmatprep.subr.bf16.mxu0 0
        %500 = vmatpush2.bf16.msra.mxu0 0
        %501 = vmatprep.subr.bf16.mxu0 0
        %502 = vmatpush2.bf16.msra.mxu0 0
        %503 = vmatprep.subr.bf16.mxu0 0
        %504 = vmatpush2.bf16.msra.mxu0 0
        %505 = vmatprep.subr.bf16.mxu0 0
        %506 = vmatpush2.bf16.msra.mxu0 0
        %507 = vmatprep.subr.bf16.mxu0 0
        %508 = vmatpush2.bf16.msra.mxu0 0
        %509 = vmatprep.mubr.bf16.mxu0 0
        %510 = vmatmul.mubr.bf16.gmra.mxu0 %v466
        %v511 = vpop.f32.mrf.mxu0
        %v512 = vadd.f32 0.0, %v511
        %v513 = vpop.f32.mrf.mxu0
        %v514 = vadd.f32 0.0, %v513
        %v515 = vpop.f32.mrf.mxu0
        %v516 = vadd.f32 0.0, %v515
        %v517 = vpop.f32.mrf.mxu0
        %v518 = vadd.f32 0.0, %v517
        %519 = vmatprep.mubr.bf16.mxu0 0
        %520 = vmatmul.mubr.bf16.gmra.mxu0 %v469
        %v521 = vpop.f32.mrf.mxu0
        %v522 = vadd.f32 0.0, %v521
        %v523 = vpop.f32.mrf.mxu0
        %v524 = vadd.f32 0.0, %v523
        %v525 = vpop.f32.mrf.mxu0
        %v526 = vadd.f32 0.0, %v525
        %v527 = vpop.f32.mrf.mxu0
        %v528 = vadd.f32 0.0, %v527
        %529 = vmatprep.mubr.bf16.mxu0 0
        %530 = vmatmul.mubr.bf16.gmra.mxu0 %v472
        %v531 = vpop.f32.mrf.mxu0
        %v532 = vadd.f32 0.0, %v531
        %v533 = vpop.f32.mrf.mxu0
        %v534 = vadd.f32 0.0, %v533
        %v535 = vpop.f32.mrf.mxu0
        %v536 = vadd.f32 0.0, %v535
        %v537 = vpop.f32.mrf.mxu0
        %v538 = vadd.f32 0.0, %v537
        %539 = vmatprep.mubr.bf16.mxu0 0
        %540 = vmatmul.mubr.bf16.gmra.mxu0 %v475
        %v541 = vpop.f32.mrf.mxu0
        %v542 = vadd.f32 0.0, %v541
        %v543 = vpop.f32.mrf.mxu0
        %v544 = vadd.f32 0.0, %v543
        %v545 = vpop.f32.mrf.mxu0
        %v546 = vadd.f32 0.0, %v545
        %v547 = vpop.f32.mrf.mxu0
        %v548 = vadd.f32 0.0, %v547
        %549 = vdwg.mxu0
        %v550 = vpack.c.bf16 %v516, %v512
        %v551 = vpack.c.bf16 %v518, %v514
        %v552 = vpack.c.bf16 %v526, %v522
        %v553 = vpack.c.bf16 %v528, %v524
        %v554 = vpack.c.bf16 %v536, %v532
        %v555 = vpack.c.bf16 %v538, %v534
        %v556 = vpack.c.bf16 %v546, %v542
        %v557 = vpack.c.bf16 %v548, %v544
        %v558 = vld [vmem:[#allocation3] sm:$0xff]
        %v559 = vld [vmem:[#allocation3 + $0x8] sm:$0xff]
        %v560 = vld [vmem:[#allocation3 + $0x10] sm:$0xff]
        %v561 = vld [vmem:[#allocation3 + $0x18] sm:$0xff]
        %v562 = vld [vmem:[#allocation3 + $0x20] sm:$0xff]
        %v563 = vld [vmem:[#allocation3 + $0x28] sm:$0xff]
        %v564 = vld [vmem:[#allocation3 + $0x30] sm:$0xff]
        %v565 = vld [vmem:[#allocation3 + $0x38] sm:$0xff]
        %570 = vrot.lane.b32.xlu0 %v550, 64
        %v571 = vpop.permute.xlu0 %570
        %572 = vrot.lane.b32.xlu0 %v552, 64
        %v573 = vpop.permute.xlu0 %572
        %574 = vrot.lane.b32.xlu0 %v554, 64
        %v575 = vpop.permute.xlu0 %574
        %576 = vrot.lane.b32.xlu0 %v556, 64
        %v577 = vpop.permute.xlu0 %576
        %vm578 = vcmask 130048
        %v580 = vsel %vm578, %v550, 0
        %v583 = vsel %vm578, %v552, 0
        %v586 = vsel %vm578, %v554, 0
        %v589 = vsel %vm578, %v556, 0
        %v592 = vsel %vm578, %v571, 0
        %v595 = vsel %vm578, %v573, 0
        %v598 = vsel %vm578, %v575, 0
        %v601 = vsel %vm578, %v577, 0
        %603 = vmatprep.subr.bf16.mxu0 0
        %604 = vmatpush1.bf16.xpose.msra.mxu0 0
        %605 = vmatprep.subr.bf16.mxu0 0
        %606 = vmatpush1.bf16.xpose.msra.mxu0 0
        %607 = vmatprep.subr.bf16.mxu0 0
        %608 = vmatpush1.bf16.xpose.msra.mxu0 0
        %609 = vmatprep.subr.bf16.mxu0 0
        %610 = vmatpush1.bf16.xpose.msra.mxu0 0
        %611 = vmatprep.subr.bf16.mxu0 0
        %612 = vmatpush1.bf16.xpose.msra.mxu0 %v601
        %613 = vmatprep.subr.bf16.mxu0 0
        %614 = vmatpush1.bf16.xpose.msra.mxu0 %v598
        %615 = vmatprep.subr.bf16.mxu0 0
        %616 = vmatpush1.bf16.xpose.msra.mxu0 %v595
        %617 = vmatprep.subr.bf16.mxu0 0
        %618 = vmatpush1.bf16.xpose.msra.mxu0 %v592
        %619 = vmatprep.subr.bf16.mxu0 0
        %620 = vmatpush2.bf16.xpose.msra.mxu0 0
        %621 = vmatprep.subr.bf16.mxu0 0
        %622 = vmatpush2.bf16.xpose.msra.mxu0 0
        %623 = vmatprep.subr.bf16.mxu0 0
        %624 = vmatpush2.bf16.xpose.msra.mxu0 0
        %625 = vmatprep.subr.bf16.mxu0 0
        %626 = vmatpush2.bf16.xpose.msra.mxu0 0
        %627 = vmatprep.subr.bf16.mxu0 0
        %628 = vmatpush2.bf16.xpose.msra.mxu0 0
        %629 = vmatprep.subr.bf16.mxu0 0
        %630 = vmatpush2.bf16.xpose.msra.mxu0 0
        %631 = vmatprep.subr.bf16.mxu0 0
        %632 = vmatpush2.bf16.xpose.msra.mxu0 0
        %633 = vmatprep.subr.bf16.mxu0 0
        %634 = vmatpush2.bf16.xpose.msra.mxu0 0
        %635 = vmatprep.mubr.bf16.mxu0 0
        %636 = vmatmul.mubr.bf16.gmra.mxu0 %v580
        %v637 = vpop.f32.mrf.mxu0
        %v638 = vadd.f32 %v558, %v637
        %v639 = vpop.f32.mrf.mxu0
        %v640 = vpop.f32.mrf.mxu0
        %v641 = vadd.f32 %v559, %v640
        %v642 = vpop.f32.mrf.mxu0
        %643 = vmatprep.mubr.bf16.mxu0 0
        %644 = vmatmul.mubr.bf16.gmra.mxu0 %v583
        %v645 = vpop.f32.mrf.mxu0
        %v646 = vadd.f32 %v560, %v645
        %v647 = vpop.f32.mrf.mxu0
        %v648 = vpop.f32.mrf.mxu0
        %v649 = vadd.f32 %v561, %v648
        %v650 = vpop.f32.mrf.mxu0
        %651 = vmatprep.mubr.bf16.mxu0 0
        %652 = vmatmul.mubr.bf16.gmra.mxu0 %v586
        %v653 = vpop.f32.mrf.mxu0
        %v654 = vadd.f32 %v562, %v653
        %v655 = vpop.f32.mrf.mxu0
        %v656 = vpop.f32.mrf.mxu0
        %v657 = vadd.f32 %v563, %v656
        %v658 = vpop.f32.mrf.mxu0
        %659 = vmatprep.mubr.bf16.mxu0 0
        %660 = vmatmul.mubr.bf16.gmra.mxu0 %v589
        %v661 = vpop.f32.mrf.mxu0
        %v662 = vadd.f32 %v564, %v661
        %v663 = vpop.f32.mrf.mxu0
        %v664 = vpop.f32.mrf.mxu0
        %v665 = vadd.f32 %v565, %v664
        %v666 = vpop.f32.mrf.mxu0
        %667 = vdwg.mxu0
        %vm668 = vcmask 523264
        %v669 = vsel %vm668, %v638, -inf
        %670 = vmax.xlane.f32.xlu0 %v669
        %v671 = vpop.xlane.xlu0 %670
        %v672 = vsel %vm668, %v641, -inf
        %673 = vmax.xlane.f32.xlu0 %v672
        %v674 = vpop.xlane.xlu0 %673
        %v675 = vsel %vm668, %v646, -inf
        %676 = vmax.xlane.f32.xlu0 %v675
        %v677 = vpop.xlane.xlu0 %676
        %v678 = vsel %vm668, %v649, -inf
        %679 = vmax.xlane.f32.xlu0 %v678
        %v680 = vpop.xlane.xlu0 %679
        %v681 = vsel %vm668, %v654, -inf
        %682 = vmax.xlane.f32.xlu0 %v681
        %v683 = vpop.xlane.xlu0 %682
        %v684 = vsel %vm668, %v657, -inf
        %685 = vmax.xlane.f32.xlu0 %v684
        %v686 = vpop.xlane.xlu0 %685
        %v687 = vsel %vm668, %v662, -inf
        %688 = vmax.xlane.f32.xlu0 %v687
        %v689 = vpop.xlane.xlu0 %688
        %v690 = vsel %vm668, %v665, -inf
        %691 = vmax.xlane.f32.xlu0 %v690
        %v692 = vpop.xlane.xlu0 %691
        %v693 = vsub.f32 %v638, %v671
        %v694 = vsub.f32 %v641, %v674
        %v695 = vsub.f32 %v646, %v677
        %v696 = vsub.f32 %v649, %v680
        %v697 = vsub.f32 %v654, %v683
        %v698 = vsub.f32 %v657, %v686
        %v699 = vsub.f32 %v662, %v689
        %v700 = vsub.f32 %v665, %v692
        %v701 = vmul.f32 %v693, 1.442695
        %v702 = vpow.pop %v701
        %v703 = vmul.f32 %v694, 1.442695
        %v704 = vpow.pop %v703
        %v705 = vmul.f32 %v695, 1.442695
        %v706 = vpow.pop %v705
        %v707 = vmul.f32 %v696, 1.442695
        %v708 = vpow.pop %v707
        %v709 = vmul.f32 %v697, 1.442695
        %v710 = vpow.pop %v709
        %v711 = vmul.f32 %v698, 1.442695
        %v712 = vpow.pop %v711
        %v713 = vmul.f32 %v699, 1.442695
        %v714 = vpow.pop %v713
        %v715 = vmul.f32 %v700, 1.442695
        %v716 = vpow.pop %v715
        %v717 = vsel %vm668, %v702, 0.0
        %718 = vadd.xlane.f32.xlu0 %v717
        %v719 = vpop.xlane.xlu0 %718
        %v720 = vsel %vm668, %v704, 0.0
        %721 = vadd.xlane.f32.xlu0 %v720
        %v722 = vpop.xlane.xlu0 %721
        %v723 = vsel %vm668, %v706, 0.0
        %724 = vadd.xlane.f32.xlu0 %v723
        %v725 = vpop.xlane.xlu0 %724
        %v726 = vsel %vm668, %v708, 0.0
        %727 = vadd.xlane.f32.xlu0 %v726
        %v728 = vpop.xlane.xlu0 %727
        %v729 = vsel %vm668, %v710, 0.0
        %730 = vadd.xlane.f32.xlu0 %v729
        %v731 = vpop.xlane.xlu0 %730
        %v732 = vsel %vm668, %v712, 0.0
        %733 = vadd.xlane.f32.xlu0 %v732
        %v734 = vpop.xlane.xlu0 %733
        %v735 = vsel %vm668, %v714, 0.0
        %736 = vadd.xlane.f32.xlu0 %v735
        %v737 = vpop.xlane.xlu0 %736
        %v738 = vsel %vm668, %v716, 0.0
        %739 = vadd.xlane.f32.xlu0 %v738
        %v740 = vpop.xlane.xlu0 %739
        %v741 = vrcp.pop %v719
        %v742 = vrcp.pop %v722
        %v743 = vrcp.pop %v725
        %v744 = vrcp.pop %v728
        %v745 = vrcp.pop %v731
        %v746 = vrcp.pop %v734
        %v747 = vrcp.pop %v737
        %v748 = vrcp.pop %v740
        %v749 = vpack.c.bf16 %v704, %v702
        %v750 = vpack.c.bf16 %v708, %v706
        %v751 = vpack.c.bf16 %v712, %v710
        %v752 = vpack.c.bf16 %v716, %v714
        %v754 = vsel %vm668, %v749, 0
        %v757 = vsel %vm668, %v750, 0
        %v760 = vsel %vm668, %v751, 0
        %v763 = vsel %vm668, %v752, 0
        %765 = vmatprep.subr.bf16.mxu0 0
        %766 = vmatpush1.bf16.msra.mxu0 0
        %767 = vmatprep.subr.bf16.mxu0 0
        %768 = vmatpush1.bf16.msra.mxu0 0
        %769 = vmatprep.subr.bf16.mxu0 0
        %770 = vmatpush1.bf16.msra.mxu0 0
        %771 = vmatprep.subr.bf16.mxu0 0
        %772 = vmatpush1.bf16.msra.mxu0 0
        %773 = vmatprep.subr.bf16.mxu0 0
        %774 = vmatpush1.bf16.msra.mxu0 %v557
        %775 = vmatprep.subr.bf16.mxu0 0
        %776 = vmatpush1.bf16.msra.mxu0 %v555
        %777 = vmatprep.subr.bf16.mxu0 0
        %778 = vmatpush1.bf16.msra.mxu0 %v553
        %779 = vmatprep.subr.bf16.mxu0 0
        %780 = vmatpush1.bf16.msra.mxu0 %v551
        %781 = vmatprep.subr.bf16.mxu0 0
        %782 = vmatpush2.bf16.msra.mxu0 0
        %783 = vmatprep.subr.bf16.mxu0 0
        %784 = vmatpush2.bf16.msra.mxu0 0
        %785 = vmatprep.subr.bf16.mxu0 0
        %786 = vmatpush2.bf16.msra.mxu0 0
        %787 = vmatprep.subr.bf16.mxu0 0
        %788 = vmatpush2.bf16.msra.mxu0 0
        %789 = vmatprep.subr.bf16.mxu0 0
        %790 = vmatpush2.bf16.msra.mxu0 0
        %791 = vmatprep.subr.bf16.mxu0 0
        %792 = vmatpush2.bf16.msra.mxu0 0
        %793 = vmatprep.subr.bf16.mxu0 0
        %794 = vmatpush2.bf16.msra.mxu0 0
        %795 = vmatprep.subr.bf16.mxu0 0
        %796 = vmatpush2.bf16.msra.mxu0 0
        %797 = vmatprep.mubr.bf16.mxu0 0
        %798 = vmatmul.mubr.bf16.gmra.mxu0 %v754
        %v799 = vpop.f32.mrf.mxu0
        %v800 = vadd.f32 0.0, %v799
        %v801 = vpop.f32.mrf.mxu0
        %v802 = vpop.f32.mrf.mxu0
        %v803 = vadd.f32 0.0, %v802
        %v804 = vpop.f32.mrf.mxu0
        %805 = vmatprep.mubr.bf16.mxu0 0
        %806 = vmatmul.mubr.bf16.gmra.mxu0 %v757
        %v807 = vpop.f32.mrf.mxu0
        %v808 = vadd.f32 0.0, %v807
        %v809 = vpop.f32.mrf.mxu0
        %v810 = vpop.f32.mrf.mxu0
        %v811 = vadd.f32 0.0, %v810
        %v812 = vpop.f32.mrf.mxu0
        %813 = vmatprep.mubr.bf16.mxu0 0
        %814 = vmatmul.mubr.bf16.gmra.mxu0 %v760
        %v815 = vpop.f32.mrf.mxu0
        %v816 = vadd.f32 0.0, %v815
        %v817 = vpop.f32.mrf.mxu0
        %v818 = vpop.f32.mrf.mxu0
        %v819 = vadd.f32 0.0, %v818
        %v820 = vpop.f32.mrf.mxu0
        %821 = vmatprep.mubr.bf16.mxu0 0
        %822 = vmatmul.mubr.bf16.gmra.mxu0 %v763
        %v823 = vpop.f32.mrf.mxu0
        %v824 = vadd.f32 0.0, %v823
        %v825 = vpop.f32.mrf.mxu0
        %v826 = vpop.f32.mrf.mxu0
        %v827 = vadd.f32 0.0, %v826
        %v828 = vpop.f32.mrf.mxu0
        %829 = vdwg.mxu0
        %v830 = vmul.f32 %v800, %v741
        %v831 = vmul.f32 %v803, %v742
        %v832 = vmul.f32 %v808, %v743
        %v833 = vmul.f32 %v811, %v744
        %v834 = vmul.f32 %v816, %v745
        %v835 = vmul.f32 %v819, %v746
        %v836 = vmul.f32 %v824, %v747
        %v837 = vmul.f32 %v827, %v748
        %v838 = vpack.c.bf16 %v831, %v830
        %v839 = vpack.c.bf16 %v833, %v832
        %v840 = vpack.c.bf16 %v835, %v834
        %v841 = vpack.c.bf16 %v837, %v836
        %v846 = vunpack.c.l.b16 %v838
        %v847 = vunpack.c.h.b16 %v838
        %v848 = vunpack.c.l.b16 %v839
        %v849 = vunpack.c.h.b16 %v839
        %v850 = vunpack.c.l.b16 %v840
        %v851 = vunpack.c.h.b16 %v840
        %v852 = vunpack.c.l.b16 %v841
        %v853 = vunpack.c.h.b16 %v841
        %v854 = vpack.c.b16 %v846, %v846
        %v855 = vpack.c.b16 %v847, %v847
        %v856 = vpack.c.b16 %v848, %v848
        %v857 = vpack.c.b16 %v849, %v849
        %v858 = vpack.c.b16 %v850, %v850
        %v859 = vpack.c.b16 %v851, %v851
        %v860 = vpack.c.b16 %v852, %v852
        %v861 = vpack.c.b16 %v853, %v853
        %vm870 = vcmask 125952
        %871 = vst.msk [vmem:[#allocation2] sm:$0xf] %vm870, %v854
        %872 = vst.msk [vmem:[#allocation2 + $0x4] sm:$0xf] %vm870, %v855
        %873 = vst.msk [vmem:[#allocation2 + $0x8] sm:$0xf] %vm870, %v856
        %874 = vst.msk [vmem:[#allocation2 + $0xc] sm:$0xf] %vm870, %v857
        %875 = vst.msk [vmem:[#allocation2 + $0x10] sm:$0xf] %vm870, %v858
        %876 = vst.msk [vmem:[#allocation2 + $0x14] sm:$0xf] %vm870, %v859
        %877 = vst.msk [vmem:[#allocation2 + $0x18] sm:$0xf] %vm870, %v860
        %878 = vst.msk [vmem:[#allocation2 + $0x1c] sm:$0xf] %vm870, %v861
        %s879 = scalar_lea.vmem [#allocation3], 64
        %v880 = vld [vmem:[%s879] sm:$0xff]
        %v881 = vld [vmem:[%s879 + $0x8] sm:$0xff]
        %v882 = vld [vmem:[%s879 + $0x10] sm:$0xff]
        %v883 = vld [vmem:[%s879 + $0x18] sm:$0xff]
        %v884 = vld [vmem:[%s879 + $0x20] sm:$0xff]
        %v885 = vld [vmem:[%s879 + $0x28] sm:$0xff]
        %v886 = vld [vmem:[%s879 + $0x30] sm:$0xff]
        %v887 = vld [vmem:[%s879 + $0x38] sm:$0xff]
        %888 = vrot.lane.b32.xlu0 %v550, 112
        %v889 = vpop.permute.xlu0 %888
        %890 = vrot.lane.b32.xlu0 %v552, 112
        %v891 = vpop.permute.xlu0 %890
        %892 = vrot.lane.b32.xlu0 %v554, 112
        %v893 = vpop.permute.xlu0 %892
        %894 = vrot.lane.b32.xlu0 %v556, 112
        %v895 = vpop.permute.xlu0 %894
        %896 = vrot.lane.b32.xlu0 %v550, 48
        %v897 = vpop.permute.xlu0 %896
        %898 = vrot.lane.b32.xlu0 %v552, 48
        %v899 = vpop.permute.xlu0 %898
        %900 = vrot.lane.b32.xlu0 %v554, 48
        %v901 = vpop.permute.xlu0 %900
        %902 = vrot.lane.b32.xlu0 %v556, 48
        %v903 = vpop.permute.xlu0 %902
        %v905 = vsel %vm578, %v889, 0
        %v908 = vsel %vm578, %v891, 0
        %v911 = vsel %vm578, %v893, 0
        %v914 = vsel %vm578, %v895, 0
        %v917 = vsel %vm578, %v897, 0
        %v920 = vsel %vm578, %v899, 0
        %v923 = vsel %vm578, %v901, 0
        %v926 = vsel %vm578, %v903, 0
        %928 = vmatprep.subr.bf16.mxu0 0
        %929 = vmatpush1.bf16.xpose.msra.mxu0 0
        %930 = vmatprep.subr.bf16.mxu0 0
        %931 = vmatpush1.bf16.xpose.msra.mxu0 0
        %932 = vmatprep.subr.bf16.mxu0 0
        %933 = vmatpush1.bf16.xpose.msra.mxu0 0
        %934 = vmatprep.subr.bf16.mxu0 0
        %935 = vmatpush1.bf16.xpose.msra.mxu0 0
        %936 = vmatprep.subr.bf16.mxu0 0
        %937 = vmatpush1.bf16.xpose.msra.mxu0 %v926
        %938 = vmatprep.subr.bf16.mxu0 0
        %939 = vmatpush1.bf16.xpose.msra.mxu0 %v923
        %940 = vmatprep.subr.bf16.mxu0 0
        %941 = vmatpush1.bf16.xpose.msra.mxu0 %v920
        %942 = vmatprep.subr.bf16.mxu0 0
        %943 = vmatpush1.bf16.xpose.msra.mxu0 %v917
        %944 = vmatprep.subr.bf16.mxu0 0
        %945 = vmatpush2.bf16.xpose.msra.mxu0 0
        %946 = vmatprep.subr.bf16.mxu0 0
        %947 = vmatpush2.bf16.xpose.msra.mxu0 0
        %948 = vmatprep.subr.bf16.mxu0 0
        %949 = vmatpush2.bf16.xpose.msra.mxu0 0
        %950 = vmatprep.subr.bf16.mxu0 0
        %951 = vmatpush2.bf16.xpose.msra.mxu0 0
        %952 = vmatprep.subr.bf16.mxu0 0
        %953 = vmatpush2.bf16.xpose.msra.mxu0 0
        %954 = vmatprep.subr.bf16.mxu0 0
        %955 = vmatpush2.bf16.xpose.msra.mxu0 0
        %956 = vmatprep.subr.bf16.mxu0 0
        %957 = vmatpush2.bf16.xpose.msra.mxu0 0
        %958 = vmatprep.subr.bf16.mxu0 0
        %959 = vmatpush2.bf16.xpose.msra.mxu0 0
        %960 = vmatprep.mubr.bf16.mxu0 0
        %961 = vmatmul.mubr.bf16.gmra.mxu0 %v905
        %v962 = vpop.f32.mrf.mxu0
        %v963 = vadd.f32 %v880, %v962
        %v964 = vpop.f32.mrf.mxu0
        %v965 = vpop.f32.mrf.mxu0
        %v966 = vadd.f32 %v881, %v965
        %v967 = vpop.f32.mrf.mxu0
        %968 = vmatprep.mubr.bf16.mxu0 0
        %969 = vmatmul.mubr.bf16.gmra.mxu0 %v908
        %v970 = vpop.f32.mrf.mxu0
        %v971 = vadd.f32 %v882, %v970
        %v972 = vpop.f32.mrf.mxu0
        %v973 = vpop.f32.mrf.mxu0
        %v974 = vadd.f32 %v883, %v973
        %v975 = vpop.f32.mrf.mxu0
        %976 = vmatprep.mubr.bf16.mxu0 0
        %977 = vmatmul.mubr.bf16.gmra.mxu0 %v911
        %v978 = vpop.f32.mrf.mxu0
        %v979 = vadd.f32 %v884, %v978
        %v980 = vpop.f32.mrf.mxu0
        %v981 = vpop.f32.mrf.mxu0
        %v982 = vadd.f32 %v885, %v981
        %v983 = vpop.f32.mrf.mxu0
        %984 = vmatprep.mubr.bf16.mxu0 0
        %985 = vmatmul.mubr.bf16.gmra.mxu0 %v914
        %v986 = vpop.f32.mrf.mxu0
        %v987 = vadd.f32 %v886, %v986
        %v988 = vpop.f32.mrf.mxu0
        %v989 = vpop.f32.mrf.mxu0
        %v990 = vadd.f32 %v887, %v989
        %v991 = vpop.f32.mrf.mxu0
        %992 = vdwg.mxu0
        %v993 = vsel %vm668, %v963, -inf
        %994 = vmax.xlane.f32.xlu0 %v993
        %v995 = vpop.xlane.xlu0 %994
        %v996 = vsel %vm668, %v966, -inf
        %997 = vmax.xlane.f32.xlu0 %v996
        %v998 = vpop.xlane.xlu0 %997
        %v999 = vsel %vm668, %v971, -inf
        %1000 = vmax.xlane.f32.xlu0 %v999
        %v1001 = vpop.xlane.xlu0 %1000
        %v1002 = vsel %vm668, %v974, -inf
        %1003 = vmax.xlane.f32.xlu0 %v1002
        %v1004 = vpop.xlane.xlu0 %1003
        %v1005 = vsel %vm668, %v979, -inf
        %1006 = vmax.xlane.f32.xlu0 %v1005
        %v1007 = vpop.xlane.xlu0 %1006
        %v1008 = vsel %vm668, %v982, -inf
        %1009 = vmax.xlane.f32.xlu0 %v1008
        %v1010 = vpop.xlane.xlu0 %1009
        %v1011 = vsel %vm668, %v987, -inf
        %1012 = vmax.xlane.f32.xlu0 %v1011
        %v1013 = vpop.xlane.xlu0 %1012
        %v1014 = vsel %vm668, %v990, -inf
        %1015 = vmax.xlane.f32.xlu0 %v1014
        %v1016 = vpop.xlane.xlu0 %1015
        %v1017 = vsub.f32 %v963, %v995
        %v1018 = vsub.f32 %v966, %v998
        %v1019 = vsub.f32 %v971, %v1001
        %v1020 = vsub.f32 %v974, %v1004
        %v1021 = vsub.f32 %v979, %v1007
        %v1022 = vsub.f32 %v982, %v1010
        %v1023 = vsub.f32 %v987, %v1013
        %v1024 = vsub.f32 %v990, %v1016
        %v1025 = vmul.f32 %v1017, 1.442695
        %v1026 = vpow.pop %v1025
        %v1027 = vmul.f32 %v1018, 1.442695
        %v1028 = vpow.pop %v1027
        %v1029 = vmul.f32 %v1019, 1.442695
        %v1030 = vpow.pop %v1029
        %v1031 = vmul.f32 %v1020, 1.442695
        %v1032 = vpow.pop %v1031
        %v1033 = vmul.f32 %v1021, 1.442695
        %v1034 = vpow.pop %v1033
        %v1035 = vmul.f32 %v1022, 1.442695
        %v1036 = vpow.pop %v1035
        %v1037 = vmul.f32 %v1023, 1.442695
        %v1038 = vpow.pop %v1037
        %v1039 = vmul.f32 %v1024, 1.442695
        %v1040 = vpow.pop %v1039
        %v1041 = vsel %vm668, %v1026, 0.0
        %1042 = vadd.xlane.f32.xlu0 %v1041
        %v1043 = vpop.xlane.xlu0 %1042
        %v1044 = vsel %vm668, %v1028, 0.0
        %1045 = vadd.xlane.f32.xlu0 %v1044
        %v1046 = vpop.xlane.xlu0 %1045
        %v1047 = vsel %vm668, %v1030, 0.0
        %1048 = vadd.xlane.f32.xlu0 %v1047
        %v1049 = vpop.xlane.xlu0 %1048
        %v1050 = vsel %vm668, %v1032, 0.0
        %1051 = vadd.xlane.f32.xlu0 %v1050
        %v1052 = vpop.xlane.xlu0 %1051
        %v1053 = vsel %vm668, %v1034, 0.0
        %1054 = vadd.xlane.f32.xlu0 %v1053
        %v1055 = vpop.xlane.xlu0 %1054
        %v1056 = vsel %vm668, %v1036, 0.0
        %1057 = vadd.xlane.f32.xlu0 %v1056
        %v1058 = vpop.xlane.xlu0 %1057
        %v1059 = vsel %vm668, %v1038, 0.0
        %1060 = vadd.xlane.f32.xlu0 %v1059
        %v1061 = vpop.xlane.xlu0 %1060
        %v1062 = vsel %vm668, %v1040, 0.0
        %1063 = vadd.xlane.f32.xlu0 %v1062
        %v1064 = vpop.xlane.xlu0 %1063
        %v1065 = vrcp.pop %v1043
        %v1066 = vrcp.pop %v1046
        %v1067 = vrcp.pop %v1049
        %v1068 = vrcp.pop %v1052
        %v1069 = vrcp.pop %v1055
        %v1070 = vrcp.pop %v1058
        %v1071 = vrcp.pop %v1061
        %v1072 = vrcp.pop %v1064
        %v1073 = vpack.c.bf16 %v1028, %v1026
        %v1074 = vpack.c.bf16 %v1032, %v1030
        %v1075 = vpack.c.bf16 %v1036, %v1034
        %v1076 = vpack.c.bf16 %v1040, %v1038
        %1081 = vrot.lane.b32.xlu0 %v551, 112
        %v1082 = vpop.permute.xlu0 %1081
        %1083 = vrot.lane.b32.xlu0 %v553, 112
        %v1084 = vpop.permute.xlu0 %1083
        %1085 = vrot.lane.b32.xlu0 %v555, 112
        %v1086 = vpop.permute.xlu0 %1085
        %1087 = vrot.lane.b32.xlu0 %v557, 112
        %v1088 = vpop.permute.xlu0 %1087
        %v1094 = vsel %vm668, %v1073, 0
        %v1097 = vsel %vm668, %v1074, 0
        %v1100 = vsel %vm668, %v1075, 0
        %v1103 = vsel %vm668, %v1076, 0
        %1105 = vmatprep.subr.bf16.mxu0 0
        %1106 = vmatpush1.bf16.msra.mxu0 0
        %1107 = vmatprep.subr.bf16.mxu0 0
        %1108 = vmatpush1.bf16.msra.mxu0 0
        %1109 = vmatprep.subr.bf16.mxu0 0
        %1110 = vmatpush1.bf16.msra.mxu0 0
        %1111 = vmatprep.subr.bf16.mxu0 0
        %1112 = vmatpush1.bf16.msra.mxu0 0
        %1113 = vmatprep.subr.bf16.mxu0 0
        %1114 = vmatpush1.bf16.msra.mxu0 %v1088
        %1115 = vmatprep.subr.bf16.mxu0 0
        %1116 = vmatpush1.bf16.msra.mxu0 %v1086
        %1117 = vmatprep.subr.bf16.mxu0 0
        %1118 = vmatpush1.bf16.msra.mxu0 %v1084
        %1119 = vmatprep.subr.bf16.mxu0 0
        %1120 = vmatpush1.bf16.msra.mxu0 %v1082
        %1121 = vmatprep.subr.bf16.mxu0 0
        %1122 = vmatpush2.bf16.msra.mxu0 0
        %1123 = vmatprep.subr.bf16.mxu0 0
        %1124 = vmatpush2.bf16.msra.mxu0 0
        %1125 = vmatprep.subr.bf16.mxu0 0
        %1126 = vmatpush2.bf16.msra.mxu0 0
        %1127 = vmatprep.subr.bf16.mxu0 0
        %1128 = vmatpush2.bf16.msra.mxu0 0
        %1129 = vmatprep.subr.bf16.mxu0 0
        %1130 = vmatpush2.bf16.msra.mxu0 0
        %1131 = vmatprep.subr.bf16.mxu0 0
        %1132 = vmatpush2.bf16.msra.mxu0 0
        %1133 = vmatprep.subr.bf16.mxu0 0
        %1134 = vmatpush2.bf16.msra.mxu0 0
        %1135 = vmatprep.subr.bf16.mxu0 0
        %1136 = vmatpush2.bf16.msra.mxu0 0
        %1137 = vmatprep.mubr.bf16.mxu0 0
        %1138 = vmatmul.mubr.bf16.gmra.mxu0 %v1094
        %v1139 = vpop.f32.mrf.mxu0
        %v1140 = vadd.f32 0.0, %v1139
        %v1141 = vpop.f32.mrf.mxu0
        %v1142 = vpop.f32.mrf.mxu0
        %v1143 = vadd.f32 0.0, %v1142
        %v1144 = vpop.f32.mrf.mxu0
        %1145 = vmatprep.mubr.bf16.mxu0 0
        %1146 = vmatmul.mubr.bf16.gmra.mxu0 %v1097
        %v1147 = vpop.f32.mrf.mxu0
        %v1148 = vadd.f32 0.0, %v1147
        %v1149 = vpop.f32.mrf.mxu0
        %v1150 = vpop.f32.mrf.mxu0
        %v1151 = vadd.f32 0.0, %v1150
        %v1152 = vpop.f32.mrf.mxu0
        %1153 = vmatprep.mubr.bf16.mxu0 0
        %1154 = vmatmul.mubr.bf16.gmra.mxu0 %v1100
        %v1155 = vpop.f32.mrf.mxu0
        %v1156 = vadd.f32 0.0, %v1155
        %v1157 = vpop.f32.mrf.mxu0
        %v1158 = vpop.f32.mrf.mxu0
        %v1159 = vadd.f32 0.0, %v1158
        %v1160 = vpop.f32.mrf.mxu0
        %1161 = vmatprep.mubr.bf16.mxu0 0
        %1162 = vmatmul.mubr.bf16.gmra.mxu0 %v1103
        %v1163 = vpop.f32.mrf.mxu0
        %v1164 = vadd.f32 0.0, %v1163
        %v1165 = vpop.f32.mrf.mxu0
        %v1166 = vpop.f32.mrf.mxu0
        %v1167 = vadd.f32 0.0, %v1166
        %v1168 = vpop.f32.mrf.mxu0
        %1169 = vdwg.mxu0
        %v1170 = vmul.f32 %v1140, %v1065
        %v1171 = vmul.f32 %v1143, %v1066
        %v1172 = vmul.f32 %v1148, %v1067
        %v1173 = vmul.f32 %v1151, %v1068
        %v1174 = vmul.f32 %v1156, %v1069
        %v1175 = vmul.f32 %v1159, %v1070
        %v1176 = vmul.f32 %v1164, %v1071
        %v1177 = vmul.f32 %v1167, %v1072
        %v1178 = vpack.c.bf16 %v1171, %v1170
        %v1179 = vpack.c.bf16 %v1173, %v1172
        %v1180 = vpack.c.bf16 %v1175, %v1174
        %v1181 = vpack.c.bf16 %v1177, %v1176
        %v1186 = vunpack.c.l.b16 %v1178
        %v1187 = vunpack.c.h.b16 %v1178
        %v1188 = vunpack.c.l.b16 %v1179
        %v1189 = vunpack.c.h.b16 %v1179
        %v1190 = vunpack.c.l.b16 %v1180
        %v1191 = vunpack.c.h.b16 %v1180
        %v1192 = vunpack.c.l.b16 %v1181
        %v1193 = vunpack.c.h.b16 %v1181
        %v1194 = vpack.c.b16 %v1186, %v1186
        %v1195 = vpack.c.b16 %v1187, %v1187
        %v1196 = vpack.c.b16 %v1188, %v1188
        %v1197 = vpack.c.b16 %v1189, %v1189
        %v1198 = vpack.c.b16 %v1190, %v1190
        %v1199 = vpack.c.b16 %v1191, %v1191
        %v1200 = vpack.c.b16 %v1192, %v1192
        %v1201 = vpack.c.b16 %v1193, %v1193
        %1202 = vrot.lane.b32.xlu0 %v1194, 16
        %v1203 = vpop.permute.xlu0 %1202
        %1204 = vrot.lane.b32.xlu0 %v1195, 16
        %v1205 = vpop.permute.xlu0 %1204
        %1206 = vrot.lane.b32.xlu0 %v1196, 16
        %v1207 = vpop.permute.xlu0 %1206
        %1208 = vrot.lane.b32.xlu0 %v1197, 16
        %v1209 = vpop.permute.xlu0 %1208
        %1210 = vrot.lane.b32.xlu0 %v1198, 16
        %v1211 = vpop.permute.xlu0 %1210
        %1212 = vrot.lane.b32.xlu0 %v1199, 16
        %v1213 = vpop.permute.xlu0 %1212
        %1214 = vrot.lane.b32.xlu0 %v1200, 16
        %v1215 = vpop.permute.xlu0 %1214
        %1216 = vrot.lane.b32.xlu0 %v1201, 16
        %v1217 = vpop.permute.xlu0 %1216
        %vm1226 = vcmask 257152
        %1227 = vst.msk [vmem:[#allocation2] sm:$0xf] %vm1226, %v1203
        %1228 = vst.msk [vmem:[#allocation2 + $0x4] sm:$0xf] %vm1226, %v1205
        %1229 = vst.msk [vmem:[#allocation2 + $0x8] sm:$0xf] %vm1226, %v1207
        %1230 = vst.msk [vmem:[#allocation2 + $0xc] sm:$0xf] %vm1226, %v1209
        %1231 = vst.msk [vmem:[#allocation2 + $0x10] sm:$0xf] %vm1226, %v1211
        %1232 = vst.msk [vmem:[#allocation2 + $0x14] sm:$0xf] %vm1226, %v1213
        %1233 = vst.msk [vmem:[#allocation2 + $0x18] sm:$0xf] %vm1226, %v1215
        %1234 = vst.msk [vmem:[#allocation2 + $0x1c] sm:$0xf] %vm1226, %v1217
        %s1235 = scalar_lea.vmem [#allocation3], 128
        %v1236 = vld [vmem:[%s1235] sm:$0xff]
        %v1237 = vld [vmem:[%s1235 + $0x8] sm:$0xff]
        %v1238 = vld [vmem:[%s1235 + $0x10] sm:$0xff]
        %v1239 = vld [vmem:[%s1235 + $0x18] sm:$0xff]
        %v1240 = vld [vmem:[%s1235 + $0x20] sm:$0xff]
        %v1241 = vld [vmem:[%s1235 + $0x28] sm:$0xff]
        %v1242 = vld [vmem:[%s1235 + $0x30] sm:$0xff]
        %v1243 = vld [vmem:[%s1235 + $0x38] sm:$0xff]
        %1244 = vrot.lane.b32.xlu0 %v550, 96
        %v1245 = vpop.permute.xlu0 %1244
        %1246 = vrot.lane.b32.xlu0 %v552, 96
        %v1247 = vpop.permute.xlu0 %1246
        %1248 = vrot.lane.b32.xlu0 %v554, 96
        %v1249 = vpop.permute.xlu0 %1248
        %1250 = vrot.lane.b32.xlu0 %v556, 96
        %v1251 = vpop.permute.xlu0 %1250
        %1252 = vrot.lane.b32.xlu0 %v550, 32
        %v1253 = vpop.permute.xlu0 %1252
        %1254 = vrot.lane.b32.xlu0 %v552, 32
        %v1255 = vpop.permute.xlu0 %1254
        %1256 = vrot.lane.b32.xlu0 %v554, 32
        %v1257 = vpop.permute.xlu0 %1256
        %1258 = vrot.lane.b32.xlu0 %v556, 32
        %v1259 = vpop.permute.xlu0 %1258
        %v1261 = vsel %vm578, %v1245, 0
        %v1264 = vsel %vm578, %v1247, 0
        %v1267 = vsel %vm578, %v1249, 0
        %v1270 = vsel %vm578, %v1251, 0
        %v1273 = vsel %vm578, %v1253, 0
        %v1276 = vsel %vm578, %v1255, 0
        %v1279 = vsel %vm578, %v1257, 0
        %v1282 = vsel %vm578, %v1259, 0
        %1284 = vmatprep.subr.bf16.mxu0 0
        %1285 = vmatpush1.bf16.xpose.msra.mxu0 0
        %1286 = vmatprep.subr.bf16.mxu0 0
        %1287 = vmatpush1.bf16.xpose.msra.mxu0 0
        %1288 = vmatprep.subr.bf16.mxu0 0
        %1289 = vmatpush1.bf16.xpose.msra.mxu0 0
        %1290 = vmatprep.subr.bf16.mxu0 0
        %1291 = vmatpush1.bf16.xpose.msra.mxu0 0
        %1292 = vmatprep.subr.bf16.mxu0 0
        %1293 = vmatpush1.bf16.xpose.msra.mxu0 %v1282
        %1294 = vmatprep.subr.bf16.mxu0 0
        %1295 = vmatpush1.bf16.xpose.msra.mxu0 %v1279
        %1296 = vmatprep.subr.bf16.mxu0 0
        %1297 = vmatpush1.bf16.xpose.msra.mxu0 %v1276
        %1298 = vmatprep.subr.bf16.mxu0 0
        %1299 = vmatpush1.bf16.xpose.msra.mxu0 %v1273
        %1300 = vmatprep.subr.bf16.mxu0 0
        %1301 = vmatpush2.bf16.xpose.msra.mxu0 0
        %1302 = vmatprep.subr.bf16.mxu0 0
        %1303 = vmatpush2.bf16.xpose.msra.mxu0 0
        %1304 = vmatprep.subr.bf16.mxu0 0
        %1305 = vmatpush2.bf16.xpose.msra.mxu0 0
        %1306 = vmatprep.subr.bf16.mxu0 0
        %1307 = vmatpush2.bf16.xpose.msra.mxu0 0
        %1308 = vmatprep.subr.bf16.mxu0 0
        %1309 = vmatpush2.bf16.xpose.msra.mxu0 0
        %1310 = vmatprep.subr.bf16.mxu0 0
        %1311 = vmatpush2.bf16.xpose.msra.mxu0 0
        %1312 = vmatprep.subr.bf16.mxu0 0
        %1313 = vmatpush2.bf16.xpose.msra.mxu0 0
        %1314 = vmatprep.subr.bf16.mxu0 0
        %1315 = vmatpush2.bf16.xpose.msra.mxu0 0
        %1316 = vmatprep.mubr.bf16.mxu0 0
        %1317 = vmatmul.mubr.bf16.gmra.mxu0 %v1261
        %v1318 = vpop.f32.mrf.mxu0
        %v1319 = vadd.f32 %v1236, %v1318
        %v1320 = vpop.f32.mrf.mxu0
        %v1321 = vpop.f32.mrf.mxu0
        %v1322 = vadd.f32 %v1237, %v1321
        %v1323 = vpop.f32.mrf.mxu0
        %1324 = vmatprep.mubr.bf16.mxu0 0
        %1325 = vmatmul.mubr.bf16.gmra.mxu0 %v1264
        %v1326 = vpop.f32.mrf.mxu0
        %v1327 = vadd.f32 %v1238, %v1326
        %v1328 = vpop.f32.mrf.mxu0
        %v1329 = vpop.f32.mrf.mxu0
        %v1330 = vadd.f32 %v1239, %v1329
        %v1331 = vpop.f32.mrf.mxu0
        %1332 = vmatprep.mubr.bf16.mxu0 0
        %1333 = vmatmul.mubr.bf16.gmra.mxu0 %v1267
        %v1334 = vpop.f32.mrf.mxu0
        %v1335 = vadd.f32 %v1240, %v1334
        %v1336 = vpop.f32.mrf.mxu0
        %v1337 = vpop.f32.mrf.mxu0
        %v1338 = vadd.f32 %v1241, %v1337
        %v1339 = vpop.f32.mrf.mxu0
        %1340 = vmatprep.mubr.bf16.mxu0 0
        %1341 = vmatmul.mubr.bf16.gmra.mxu0 %v1270
        %v1342 = vpop.f32.mrf.mxu0
        %v1343 = vadd.f32 %v1242, %v1342
        %v1344 = vpop.f32.mrf.mxu0
        %v1345 = vpop.f32.mrf.mxu0
        %v1346 = vadd.f32 %v1243, %v1345
        %v1347 = vpop.f32.mrf.mxu0
        %1348 = vdwg.mxu0
        %v1349 = vsel %vm668, %v1319, -inf
        %1350 = vmax.xlane.f32.xlu0 %v1349
        %v1351 = vpop.xlane.xlu0 %1350
        %v1352 = vsel %vm668, %v1322, -inf
        %1353 = vmax.xlane.f32.xlu0 %v1352
        %v1354 = vpop.xlane.xlu0 %1353
        %v1355 = vsel %vm668, %v1327, -inf
        %1356 = vmax.xlane.f32.xlu0 %v1355
        %v1357 = vpop.xlane.xlu0 %1356
        %v1358 = vsel %vm668, %v1330, -inf
        %1359 = vmax.xlane.f32.xlu0 %v1358
        %v1360 = vpop.xlane.xlu0 %1359
        %v1361 = vsel %vm668, %v1335, -inf
        %1362 = vmax.xlane.f32.xlu0 %v1361
        %v1363 = vpop.xlane.xlu0 %1362
        %v1364 = vsel %vm668, %v1338, -inf
        %1365 = vmax.xlane.f32.xlu0 %v1364
        %v1366 = vpop.xlane.xlu0 %1365
        %v1367 = vsel %vm668, %v1343, -inf
        %1368 = vmax.xlane.f32.xlu0 %v1367
        %v1369 = vpop.xlane.xlu0 %1368
        %v1370 = vsel %vm668, %v1346, -inf
        %1371 = vmax.xlane.f32.xlu0 %v1370
        %v1372 = vpop.xlane.xlu0 %1371
        %v1373 = vsub.f32 %v1319, %v1351
        %v1374 = vsub.f32 %v1322, %v1354
        %v1375 = vsub.f32 %v1327, %v1357
        %v1376 = vsub.f32 %v1330, %v1360
        %v1377 = vsub.f32 %v1335, %v1363
        %v1378 = vsub.f32 %v1338, %v1366
        %v1379 = vsub.f32 %v1343, %v1369
        %v1380 = vsub.f32 %v1346, %v1372
        %v1381 = vmul.f32 %v1373, 1.442695
        %v1382 = vpow.pop %v1381
        %v1383 = vmul.f32 %v1374, 1.442695
        %v1384 = vpow.pop %v1383
        %v1385 = vmul.f32 %v1375, 1.442695
        %v1386 = vpow.pop %v1385
        %v1387 = vmul.f32 %v1376, 1.442695
        %v1388 = vpow.pop %v1387
        %v1389 = vmul.f32 %v1377, 1.442695
        %v1390 = vpow.pop %v1389
        %v1391 = vmul.f32 %v1378, 1.442695
        %v1392 = vpow.pop %v1391
        %v1393 = vmul.f32 %v1379, 1.442695
        %v1394 = vpow.pop %v1393
        %v1395 = vmul.f32 %v1380, 1.442695
        %v1396 = vpow.pop %v1395
        %v1397 = vsel %vm668, %v1382, 0.0
        %1398 = vadd.xlane.f32.xlu0 %v1397
        %v1399 = vpop.xlane.xlu0 %1398
        %v1400 = vsel %vm668, %v1384, 0.0
        %1401 = vadd.xlane.f32.xlu0 %v1400
        %v1402 = vpop.xlane.xlu0 %1401
        %v1403 = vsel %vm668, %v1386, 0.0
        %1404 = vadd.xlane.f32.xlu0 %v1403
        %v1405 = vpop.xlane.xlu0 %1404
        %v1406 = vsel %vm668, %v1388, 0.0
        %1407 = vadd.xlane.f32.xlu0 %v1406
        %v1408 = vpop.xlane.xlu0 %1407
        %v1409 = vsel %vm668, %v1390, 0.0
        %1410 = vadd.xlane.f32.xlu0 %v1409
        %v1411 = vpop.xlane.xlu0 %1410
        %v1412 = vsel %vm668, %v1392, 0.0
        %1413 = vadd.xlane.f32.xlu0 %v1412
        %v1414 = vpop.xlane.xlu0 %1413
        %v1415 = vsel %vm668, %v1394, 0.0
        %1416 = vadd.xlane.f32.xlu0 %v1415
        %v1417 = vpop.xlane.xlu0 %1416
        %v1418 = vsel %vm668, %v1396, 0.0
        %1419 = vadd.xlane.f32.xlu0 %v1418
        %v1420 = vpop.xlane.xlu0 %1419
        %v1421 = vrcp.pop %v1399
        %v1422 = vrcp.pop %v1402
        %v1423 = vrcp.pop %v1405
        %v1424 = vrcp.pop %v1408
        %v1425 = vrcp.pop %v1411
        %v1426 = vrcp.pop %v1414
        %v1427 = vrcp.pop %v1417
        %v1428 = vrcp.pop %v1420
        %v1429 = vpack.c.bf16 %v1384, %v1382
        %v1430 = vpack.c.bf16 %v1388, %v1386
        %v1431 = vpack.c.bf16 %v1392, %v1390
        %v1432 = vpack.c.bf16 %v1396, %v1394
        %1433 = vrot.lane.b32.xlu0 %v551, 96
        %v1434 = vpop.permute.xlu0 %1433
        %1435 = vrot.lane.b32.xlu0 %v553, 96
        %v1436 = vpop.permute.xlu0 %1435
        %1437 = vrot.lane.b32.xlu0 %v555, 96
        %v1438 = vpop.permute.xlu0 %1437
        %1439 = vrot.lane.b32.xlu0 %v557, 96
        %v1440 = vpop.permute.xlu0 %1439
        %v1446 = vsel %vm668, %v1429, 0
        %v1449 = vsel %vm668, %v1430, 0
        %v1452 = vsel %vm668, %v1431, 0
        %v1455 = vsel %vm668, %v1432, 0
        %1457 = vmatprep.subr.bf16.mxu0 0
        %1458 = vmatpush1.bf16.msra.mxu0 0
        %1459 = vmatprep.subr.bf16.mxu0 0
        %1460 = vmatpush1.bf16.msra.mxu0 0
        %1461 = vmatprep.subr.bf16.mxu0 0
        %1462 = vmatpush1.bf16.msra.mxu0 0
        %1463 = vmatprep.subr.bf16.mxu0 0
        %1464 = vmatpush1.bf16.msra.mxu0 0
        %1465 = vmatprep.subr.bf16.mxu0 0
        %1466 = vmatpush1.bf16.msra.mxu0 %v1440
        %1467 = vmatprep.subr.bf16.mxu0 0
        %1468 = vmatpush1.bf16.msra.mxu0 %v1438
        %1469 = vmatprep.subr.bf16.mxu0 0
        %1470 = vmatpush1.bf16.msra.mxu0 %v1436
        %1471 = vmatprep.subr.bf16.mxu0 0
        %1472 = vmatpush1.bf16.msra.mxu0 %v1434
        %1473 = vmatprep.subr.bf16.mxu0 0
        %1474 = vmatpush2.bf16.msra.mxu0 0
        %1475 = vmatprep.subr.bf16.mxu0 0
        %1476 = vmatpush2.bf16.msra.mxu0 0
        %1477 = vmatprep.subr.bf16.mxu0 0
        %1478 = vmatpush2.bf16.msra.mxu0 0
        %1479 = vmatprep.subr.bf16.mxu0 0
        %1480 = vmatpush2.bf16.msra.mxu0 0
        %1481 = vmatprep.subr.bf16.mxu0 0
        %1482 = vmatpush2.bf16.msra.mxu0 0
        %1483 = vmatprep.subr.bf16.mxu0 0
        %1484 = vmatpush2.bf16.msra.mxu0 0
        %1485 = vmatprep.subr.bf16.mxu0 0
        %1486 = vmatpush2.bf16.msra.mxu0 0
        %1487 = vmatprep.subr.bf16.mxu0 0
        %1488 = vmatpush2.bf16.msra.mxu0 0
        %1489 = vmatprep.mubr.bf16.mxu0 0
        %1490 = vmatmul.mubr.bf16.gmra.mxu0 %v1446
        %v1491 = vpop.f32.mrf.mxu0
        %v1492 = vadd.f32 0.0, %v1491
        %v1493 = vpop.f32.mrf.mxu0
        %v1494 = vpop.f32.mrf.mxu0
        %v1495 = vadd.f32 0.0, %v1494
        %v1496 = vpop.f32.mrf.mxu0
        %1497 = vmatprep.mubr.bf16.mxu0 0
        %1498 = vmatmul.mubr.bf16.gmra.mxu0 %v1449
        %v1499 = vpop.f32.mrf.mxu0
        %v1500 = vadd.f32 0.0, %v1499
        %v1501 = vpop.f32.mrf.mxu0
        %v1502 = vpop.f32.mrf.mxu0
        %v1503 = vadd.f32 0.0, %v1502
        %v1504 = vpop.f32.mrf.mxu0
        %1505 = vmatprep.mubr.bf16.mxu0 0
        %1506 = vmatmul.mubr.bf16.gmra.mxu0 %v1452
        %v1507 = vpop.f32.mrf.mxu0
        %v1508 = vadd.f32 0.0, %v1507
        %v1509 = vpop.f32.mrf.mxu0
        %v1510 = vpop.f32.mrf.mxu0
        %v1511 = vadd.f32 0.0, %v1510
        %v1512 = vpop.f32.mrf.mxu0
        %1513 = vmatprep.mubr.bf16.mxu0 0
        %1514 = vmatmul.mubr.bf16.gmra.mxu0 %v1455
        %v1515 = vpop.f32.mrf.mxu0
        %v1516 = vadd.f32 0.0, %v1515
        %v1517 = vpop.f32.mrf.mxu0
        %v1518 = vpop.f32.mrf.mxu0
        %v1519 = vadd.f32 0.0, %v1518
        %v1520 = vpop.f32.mrf.mxu0
        %1521 = vdwg.mxu0
        %v1522 = vmul.f32 %v1492, %v1421
        %v1523 = vmul.f32 %v1495, %v1422
        %v1524 = vmul.f32 %v1500, %v1423
        %v1525 = vmul.f32 %v1503, %v1424
        %v1526 = vmul.f32 %v1508, %v1425
        %v1527 = vmul.f32 %v1511, %v1426
        %v1528 = vmul.f32 %v1516, %v1427
        %v1529 = vmul.f32 %v1519, %v1428
        %v1530 = vpack.c.bf16 %v1523, %v1522
        %v1531 = vpack.c.bf16 %v1525, %v1524
        %v1532 = vpack.c.bf16 %v1527, %v1526
        %v1533 = vpack.c.bf16 %v1529, %v1528
        %v1538 = vunpack.c.l.b16 %v1530
        %v1539 = vunpack.c.h.b16 %v1530
        %v1540 = vunpack.c.l.b16 %v1531
        %v1541 = vunpack.c.h.b16 %v1531
        %v1542 = vunpack.c.l.b16 %v1532
        %v1543 = vunpack.c.h.b16 %v1532
        %v1544 = vunpack.c.l.b16 %v1533
        %v1545 = vunpack.c.h.b16 %v1533
        %v1546 = vpack.c.b16 %v1538, %v1538
        %v1547 = vpack.c.b16 %v1539, %v1539
        %v1548 = vpack.c.b16 %v1540, %v1540
        %v1549 = vpack.c.b16 %v1541, %v1541
        %v1550 = vpack.c.b16 %v1542, %v1542
        %v1551 = vpack.c.b16 %v1543, %v1543
        %v1552 = vpack.c.b16 %v1544, %v1544
        %v1553 = vpack.c.b16 %v1545, %v1545
        %1554 = vrot.lane.b32.xlu0 %v1546, 32
        %v1555 = vpop.permute.xlu0 %1554
        %1556 = vrot.lane.b32.xlu0 %v1547, 32
        %v1557 = vpop.permute.xlu0 %1556
        %1558 = vrot.lane.b32.xlu0 %v1548, 32
        %v1559 = vpop.permute.xlu0 %1558
        %1560 = vrot.lane.b32.xlu0 %v1549, 32
        %v1561 = vpop.permute.xlu0 %1560
        %1562 = vrot.lane.b32.xlu0 %v1550, 32
        %v1563 = vpop.permute.xlu0 %1562
        %1564 = vrot.lane.b32.xlu0 %v1551, 32
        %v1565 = vpop.permute.xlu0 %1564
        %1566 = vrot.lane.b32.xlu0 %v1552, 32
        %v1567 = vpop.permute.xlu0 %1566
        %1568 = vrot.lane.b32.xlu0 %v1553, 32
        %v1569 = vpop.permute.xlu0 %1568
        %vm1578 = vcmask 388352
        %1579 = vst.msk [vmem:[#allocation2] sm:$0xf] %vm1578, %v1555
        %1580 = vst.msk [vmem:[#allocation2 + $0x4] sm:$0xf] %vm1578, %v1557
        %1581 = vst.msk [vmem:[#allocation2 + $0x8] sm:$0xf] %vm1578, %v1559
        %1582 = vst.msk [vmem:[#allocation2 + $0xc] sm:$0xf] %vm1578, %v1561
        %1583 = vst.msk [vmem:[#allocation2 + $0x10] sm:$0xf] %vm1578, %v1563
        %1584 = vst.msk [vmem:[#allocation2 + $0x14] sm:$0xf] %vm1578, %v1565
        %1585 = vst.msk [vmem:[#allocation2 + $0x18] sm:$0xf] %vm1578, %v1567
        %1586 = vst.msk [vmem:[#allocation2 + $0x1c] sm:$0xf] %vm1578, %v1569
        %s1587 = scalar_lea.vmem [#allocation3], 192
        %v1588 = vld [vmem:[%s1587] sm:$0xff]
        %v1589 = vld [vmem:[%s1587 + $0x8] sm:$0xff]
        %v1590 = vld [vmem:[%s1587 + $0x10] sm:$0xff]
        %v1591 = vld [vmem:[%s1587 + $0x18] sm:$0xff]
        %v1592 = vld [vmem:[%s1587 + $0x20] sm:$0xff]
        %v1593 = vld [vmem:[%s1587 + $0x28] sm:$0xff]
        %v1594 = vld [vmem:[%s1587 + $0x30] sm:$0xff]
        %v1595 = vld [vmem:[%s1587 + $0x38] sm:$0xff]
        %1596 = vrot.lane.b32.xlu0 %v550, 80
        %v1597 = vpop.permute.xlu0 %1596
        %1598 = vrot.lane.b32.xlu0 %v552, 80
        %v1599 = vpop.permute.xlu0 %1598
        %1600 = vrot.lane.b32.xlu0 %v554, 80
        %v1601 = vpop.permute.xlu0 %1600
        %1602 = vrot.lane.b32.xlu0 %v556, 80
        %v1603 = vpop.permute.xlu0 %1602
        %1604 = vrot.lane.b32.xlu0 %v550, 16
        %v1605 = vpop.permute.xlu0 %1604
        %1606 = vrot.lane.b32.xlu0 %v552, 16
        %v1607 = vpop.permute.xlu0 %1606
        %1608 = vrot.lane.b32.xlu0 %v554, 16
        %v1609 = vpop.permute.xlu0 %1608
        %1610 = vrot.lane.b32.xlu0 %v556, 16
        %v1611 = vpop.permute.xlu0 %1610
        %v1613 = vsel %vm578, %v1597, 0
        %v1616 = vsel %vm578, %v1599, 0
        %v1619 = vsel %vm578, %v1601, 0
        %v1622 = vsel %vm578, %v1603, 0
        %v1625 = vsel %vm578, %v1605, 0
        %v1628 = vsel %vm578, %v1607, 0
        %v1631 = vsel %vm578, %v1609, 0
        %v1634 = vsel %vm578, %v1611, 0
        %1636 = vmatprep.subr.bf16.mxu0 0
        %1637 = vmatpush1.bf16.xpose.msra.mxu0 0
        %1638 = vmatprep.subr.bf16.mxu0 0
        %1639 = vmatpush1.bf16.xpose.msra.mxu0 0
        %1640 = vmatprep.subr.bf16.mxu0 0
        %1641 = vmatpush1.bf16.xpose.msra.mxu0 0
        %1642 = vmatprep.subr.bf16.mxu0 0
        %1643 = vmatpush1.bf16.xpose.msra.mxu0 0
        %1644 = vmatprep.subr.bf16.mxu0 0
        %1645 = vmatpush1.bf16.xpose.msra.mxu0 %v1634
        %1646 = vmatprep.subr.bf16.mxu0 0
        %1647 = vmatpush1.bf16.xpose.msra.mxu0 %v1631
        %1648 = vmatprep.subr.bf16.mxu0 0
        %1649 = vmatpush1.bf16.xpose.msra.mxu0 %v1628
        %1650 = vmatprep.subr.bf16.mxu0 0
        %1651 = vmatpush1.bf16.xpose.msra.mxu0 %v1625
        %1652 = vmatprep.subr.bf16.mxu0 0
        %1653 = vmatpush2.bf16.xpose.msra.mxu0 0
        %1654 = vmatprep.subr.bf16.mxu0 0
        %1655 = vmatpush2.bf16.xpose.msra.mxu0 0
        %1656 = vmatprep.subr.bf16.mxu0 0
        %1657 = vmatpush2.bf16.xpose.msra.mxu0 0
        %1658 = vmatprep.subr.bf16.mxu0 0
        %1659 = vmatpush2.bf16.xpose.msra.mxu0 0
        %1660 = vmatprep.subr.bf16.mxu0 0
        %1661 = vmatpush2.bf16.xpose.msra.mxu0 0
        %1662 = vmatprep.subr.bf16.mxu0 0
        %1663 = vmatpush2.bf16.xpose.msra.mxu0 0
        %1664 = vmatprep.subr.bf16.mxu0 0
        %1665 = vmatpush2.bf16.xpose.msra.mxu0 0
        %1666 = vmatprep.subr.bf16.mxu0 0
        %1667 = vmatpush2.bf16.xpose.msra.mxu0 0
        %1668 = vmatprep.mubr.bf16.mxu0 0
        %1669 = vmatmul.mubr.bf16.gmra.mxu0 %v1613
        %v1670 = vpop.f32.mrf.mxu0
        %v1671 = vadd.f32 %v1588, %v1670
        %v1672 = vpop.f32.mrf.mxu0
        %v1673 = vpop.f32.mrf.mxu0
        %v1674 = vadd.f32 %v1589, %v1673
        %v1675 = vpop.f32.mrf.mxu0
        %1676 = vmatprep.mubr.bf16.mxu0 0
        %1677 = vmatmul.mubr.bf16.gmra.mxu0 %v1616
        %v1678 = vpop.f32.mrf.mxu0
        %v1679 = vadd.f32 %v1590, %v1678
        %v1680 = vpop.f32.mrf.mxu0
        %v1681 = vpop.f32.mrf.mxu0
        %v1682 = vadd.f32 %v1591, %v1681
        %v1683 = vpop.f32.mrf.mxu0
        %1684 = vmatprep.mubr.bf16.mxu0 0
        %1685 = vmatmul.mubr.bf16.gmra.mxu0 %v1619
        %v1686 = vpop.f32.mrf.mxu0
        %v1687 = vadd.f32 %v1592, %v1686
        %v1688 = vpop.f32.mrf.mxu0
        %v1689 = vpop.f32.mrf.mxu0
        %v1690 = vadd.f32 %v1593, %v1689
        %v1691 = vpop.f32.mrf.mxu0
        %1692 = vmatprep.mubr.bf16.mxu0 0
        %1693 = vmatmul.mubr.bf16.gmra.mxu0 %v1622
        %v1694 = vpop.f32.mrf.mxu0
        %v1695 = vadd.f32 %v1594, %v1694
        %v1696 = vpop.f32.mrf.mxu0
        %v1697 = vpop.f32.mrf.mxu0
        %v1698 = vadd.f32 %v1595, %v1697
        %v1699 = vpop.f32.mrf.mxu0
        %1700 = vdwg.mxu0
        %v1701 = vsel %vm668, %v1671, -inf
        %1702 = vmax.xlane.f32.xlu0 %v1701
        %v1703 = vpop.xlane.xlu0 %1702
        %v1704 = vsel %vm668, %v1674, -inf
        %1705 = vmax.xlane.f32.xlu0 %v1704
        %v1706 = vpop.xlane.xlu0 %1705
        %v1707 = vsel %vm668, %v1679, -inf
        %1708 = vmax.xlane.f32.xlu0 %v1707
        %v1709 = vpop.xlane.xlu0 %1708
        %v1710 = vsel %vm668, %v1682, -inf
        %1711 = vmax.xlane.f32.xlu0 %v1710
        %v1712 = vpop.xlane.xlu0 %1711
        %v1713 = vsel %vm668, %v1687, -inf
        %1714 = vmax.xlane.f32.xlu0 %v1713
        %v1715 = vpop.xlane.xlu0 %1714
        %v1716 = vsel %vm668, %v1690, -inf
        %1717 = vmax.xlane.f32.xlu0 %v1716
        %v1718 = vpop.xlane.xlu0 %1717
        %v1719 = vsel %vm668, %v1695, -inf
        %1720 = vmax.xlane.f32.xlu0 %v1719
        %v1721 = vpop.xlane.xlu0 %1720
        %v1722 = vsel %vm668, %v1698, -inf
        %1723 = vmax.xlane.f32.xlu0 %v1722
        %v1724 = vpop.xlane.xlu0 %1723
        %v1725 = vsub.f32 %v1671, %v1703
        %v1726 = vsub.f32 %v1674, %v1706
        %v1727 = vsub.f32 %v1679, %v1709
        %v1728 = vsub.f32 %v1682, %v1712
        %v1729 = vsub.f32 %v1687, %v1715
        %v1730 = vsub.f32 %v1690, %v1718
        %v1731 = vsub.f32 %v1695, %v1721
        %v1732 = vsub.f32 %v1698, %v1724
        %v1733 = vmul.f32 %v1725, 1.442695
        %v1734 = vpow.pop %v1733
        %v1735 = vmul.f32 %v1726, 1.442695
        %v1736 = vpow.pop %v1735
        %v1737 = vmul.f32 %v1727, 1.442695
        %v1738 = vpow.pop %v1737
        %v1739 = vmul.f32 %v1728, 1.442695
        %v1740 = vpow.pop %v1739
        %v1741 = vmul.f32 %v1729, 1.442695
        %v1742 = vpow.pop %v1741
        %v1743 = vmul.f32 %v1730, 1.442695
        %v1744 = vpow.pop %v1743
        %v1745 = vmul.f32 %v1731, 1.442695
        %v1746 = vpow.pop %v1745
        %v1747 = vmul.f32 %v1732, 1.442695
        %v1748 = vpow.pop %v1747
        %v1749 = vsel %vm668, %v1734, 0.0
        %1750 = vadd.xlane.f32.xlu0 %v1749
        %v1751 = vpop.xlane.xlu0 %1750
        %v1752 = vsel %vm668, %v1736, 0.0
        %1753 = vadd.xlane.f32.xlu0 %v1752
        %v1754 = vpop.xlane.xlu0 %1753
        %v1755 = vsel %vm668, %v1738, 0.0
        %1756 = vadd.xlane.f32.xlu0 %v1755
        %v1757 = vpop.xlane.xlu0 %1756
        %v1758 = vsel %vm668, %v1740, 0.0
        %1759 = vadd.xlane.f32.xlu0 %v1758
        %v1760 = vpop.xlane.xlu0 %1759
        %v1761 = vsel %vm668, %v1742, 0.0
        %1762 = vadd.xlane.f32.xlu0 %v1761
        %v1763 = vpop.xlane.xlu0 %1762
        %v1764 = vsel %vm668, %v1744, 0.0
        %1765 = vadd.xlane.f32.xlu0 %v1764
        %v1766 = vpop.xlane.xlu0 %1765
        %v1767 = vsel %vm668, %v1746, 0.0
        %1768 = vadd.xlane.f32.xlu0 %v1767
        %v1769 = vpop.xlane.xlu0 %1768
        %v1770 = vsel %vm668, %v1748, 0.0
        %1771 = vadd.xlane.f32.xlu0 %v1770
        %v1772 = vpop.xlane.xlu0 %1771
        %v1773 = vrcp.pop %v1751
        %v1774 = vrcp.pop %v1754
        %v1775 = vrcp.pop %v1757
        %v1776 = vrcp.pop %v1760
        %v1777 = vrcp.pop %v1763
        %v1778 = vrcp.pop %v1766
        %v1779 = vrcp.pop %v1769
        %v1780 = vrcp.pop %v1772
        %v1781 = vpack.c.bf16 %v1736, %v1734
        %v1782 = vpack.c.bf16 %v1740, %v1738
        %v1783 = vpack.c.bf16 %v1744, %v1742
        %v1784 = vpack.c.bf16 %v1748, %v1746
        %1785 = vrot.lane.b32.xlu0 %v551, 80
        %v1786 = vpop.permute.xlu0 %1785
        %1787 = vrot.lane.b32.xlu0 %v553, 80
        %v1788 = vpop.permute.xlu0 %1787
        %1789 = vrot.lane.b32.xlu0 %v555, 80
        %v1790 = vpop.permute.xlu0 %1789
        %1791 = vrot.lane.b32.xlu0 %v557, 80
        %v1792 = vpop.permute.xlu0 %1791
        %v1798 = vsel %vm668, %v1781, 0
        %v1801 = vsel %vm668, %v1782, 0
        %v1804 = vsel %vm668, %v1783, 0
        %v1807 = vsel %vm668, %v1784, 0
        %1809 = vmatprep.subr.bf16.mxu0 0
        %1810 = vmatpush1.bf16.msra.mxu0 0
        %1811 = vmatprep.subr.bf16.mxu0 0
        %1812 = vmatpush1.bf16.msra.mxu0 0
        %1813 = vmatprep.subr.bf16.mxu0 0
        %1814 = vmatpush1.bf16.msra.mxu0 0
        %1815 = vmatprep.subr.bf16.mxu0 0
        %1816 = vmatpush1.bf16.msra.mxu0 0
        %1817 = vmatprep.subr.bf16.mxu0 0
        %1818 = vmatpush1.bf16.msra.mxu0 %v1792
        %1819 = vmatprep.subr.bf16.mxu0 0
        %1820 = vmatpush1.bf16.msra.mxu0 %v1790
        %1821 = vmatprep.subr.bf16.mxu0 0
        %1822 = vmatpush1.bf16.msra.mxu0 %v1788
        %1823 = vmatprep.subr.bf16.mxu0 0
        %1824 = vmatpush1.bf16.msra.mxu0 %v1786
        %1825 = vmatprep.subr.bf16.mxu0 0
        %1826 = vmatpush2.bf16.msra.mxu0 0
        %1827 = vmatprep.subr.bf16.mxu0 0
        %1828 = vmatpush2.bf16.msra.mxu0 0
        %1829 = vmatprep.subr.bf16.mxu0 0
        %1830 = vmatpush2.bf16.msra.mxu0 0
        %1831 = vmatprep.subr.bf16.mxu0 0
        %1832 = vmatpush2.bf16.msra.mxu0 0
        %1833 = vmatprep.subr.bf16.mxu0 0
        %1834 = vmatpush2.bf16.msra.mxu0 0
        %1835 = vmatprep.subr.bf16.mxu0 0
        %1836 = vmatpush2.bf16.msra.mxu0 0
        %1837 = vmatprep.subr.bf16.mxu0 0
        %1838 = vmatpush2.bf16.msra.mxu0 0
        %1839 = vmatprep.subr.bf16.mxu0 0
        %1840 = vmatpush2.bf16.msra.mxu0 0
        %1841 = vmatprep.mubr.bf16.mxu0 0
        %1842 = vmatmul.mubr.bf16.gmra.mxu0 %v1798
        %v1843 = vpop.f32.mrf.mxu0
        %v1844 = vadd.f32 0.0, %v1843
        %v1845 = vpop.f32.mrf.mxu0
        %v1846 = vpop.f32.mrf.mxu0
        %v1847 = vadd.f32 0.0, %v1846
        %v1848 = vpop.f32.mrf.mxu0
        %1849 = vmatprep.mubr.bf16.mxu0 0
        %1850 = vmatmul.mubr.bf16.gmra.mxu0 %v1801
        %v1851 = vpop.f32.mrf.mxu0
        %v1852 = vadd.f32 0.0, %v1851
        %v1853 = vpop.f32.mrf.mxu0
        %v1854 = vpop.f32.mrf.mxu0
        %v1855 = vadd.f32 0.0, %v1854
        %v1856 = vpop.f32.mrf.mxu0
        %1857 = vmatprep.mubr.bf16.mxu0 0
        %1858 = vmatmul.mubr.bf16.gmra.mxu0 %v1804
        %v1859 = vpop.f32.mrf.mxu0
        %v1860 = vadd.f32 0.0, %v1859
        %v1861 = vpop.f32.mrf.mxu0
        %v1862 = vpop.f32.mrf.mxu0
        %v1863 = vadd.f32 0.0, %v1862
        %v1864 = vpop.f32.mrf.mxu0
        %1865 = vmatprep.mubr.bf16.mxu0 0
        %1866 = vmatmul.mubr.bf16.gmra.mxu0 %v1807
        %v1867 = vpop.f32.mrf.mxu0
        %v1868 = vadd.f32 0.0, %v1867
        %v1869 = vpop.f32.mrf.mxu0
        %v1870 = vpop.f32.mrf.mxu0
        %v1871 = vadd.f32 0.0, %v1870
        %v1872 = vpop.f32.mrf.mxu0
        %1873 = vdwg.mxu0
        %v1874 = vmul.f32 %v1844, %v1773
        %v1875 = vmul.f32 %v1847, %v1774
        %v1876 = vmul.f32 %v1852, %v1775
        %v1877 = vmul.f32 %v1855, %v1776
        %v1878 = vmul.f32 %v1860, %v1777
        %v1879 = vmul.f32 %v1863, %v1778
        %v1880 = vmul.f32 %v1868, %v1779
        %v1881 = vmul.f32 %v1871, %v1780
        %v1882 = vpack.c.bf16 %v1875, %v1874
        %v1883 = vpack.c.bf16 %v1877, %v1876
        %v1884 = vpack.c.bf16 %v1879, %v1878
        %v1885 = vpack.c.bf16 %v1881, %v1880
        %v1890 = vunpack.c.l.b16 %v1882
        %v1891 = vunpack.c.h.b16 %v1882
        %v1892 = vunpack.c.l.b16 %v1883
        %v1893 = vunpack.c.h.b16 %v1883
        %v1894 = vunpack.c.l.b16 %v1884
        %v1895 = vunpack.c.h.b16 %v1884
        %v1896 = vunpack.c.l.b16 %v1885
        %v1897 = vunpack.c.h.b16 %v1885
        %v1898 = vpack.c.b16 %v1890, %v1890
        %v1899 = vpack.c.b16 %v1891, %v1891
        %v1900 = vpack.c.b16 %v1892, %v1892
        %v1901 = vpack.c.b16 %v1893, %v1893
        %v1902 = vpack.c.b16 %v1894, %v1894
        %v1903 = vpack.c.b16 %v1895, %v1895
        %v1904 = vpack.c.b16 %v1896, %v1896
        %v1905 = vpack.c.b16 %v1897, %v1897
        %1906 = vrot.lane.b32.xlu0 %v1898, 48
        %v1907 = vpop.permute.xlu0 %1906
        %1908 = vrot.lane.b32.xlu0 %v1899, 48
        %v1909 = vpop.permute.xlu0 %1908
        %1910 = vrot.lane.b32.xlu0 %v1900, 48
        %v1911 = vpop.permute.xlu0 %1910
        %1912 = vrot.lane.b32.xlu0 %v1901, 48
        %v1913 = vpop.permute.xlu0 %1912
        %1914 = vrot.lane.b32.xlu0 %v1902, 48
        %v1915 = vpop.permute.xlu0 %1914
        %1916 = vrot.lane.b32.xlu0 %v1903, 48
        %v1917 = vpop.permute.xlu0 %1916
        %1918 = vrot.lane.b32.xlu0 %v1904, 48
        %v1919 = vpop.permute.xlu0 %1918
        %1920 = vrot.lane.b32.xlu0 %v1905, 48
        %v1921 = vpop.permute.xlu0 %1920
        %vm1930 = vcmask 519552
        %1931 = vst.msk [vmem:[#allocation2] sm:$0xf] %vm1930, %v1907
        %1932 = vst.msk [vmem:[#allocation2 + $0x4] sm:$0xf] %vm1930, %v1909
        %1933 = vst.msk [vmem:[#allocation2 + $0x8] sm:$0xf] %vm1930, %v1911
        %1934 = vst.msk [vmem:[#allocation2 + $0xc] sm:$0xf] %vm1930, %v1913
        %1935 = vst.msk [vmem:[#allocation2 + $0x10] sm:$0xf] %vm1930, %v1915
        %1936 = vst.msk [vmem:[#allocation2 + $0x14] sm:$0xf] %vm1930, %v1917
        %1937 = vst.msk [vmem:[#allocation2 + $0x18] sm:$0xf] %vm1930, %v1919
        %1938 = vst.msk [vmem:[#allocation2 + $0x1c] sm:$0xf] %vm1930, %v1921
        %v1939 = vld [vmem:[#allocation2] sm:$0xf]
        %v1940 = vld [vmem:[#allocation2 + $0x4] sm:$0xf]
        %v1941 = vld [vmem:[#allocation2 + $0x8] sm:$0xf]
        %v1942 = vld [vmem:[#allocation2 + $0xc] sm:$0xf]
        %v1943 = vld [vmem:[#allocation2 + $0x10] sm:$0xf]
        %v1944 = vld [vmem:[#allocation2 + $0x14] sm:$0xf]
        %v1945 = vld [vmem:[#allocation2 + $0x18] sm:$0xf]
        %v1946 = vld [vmem:[#allocation2 + $0x1c] sm:$0xf]
        %v1947 = vld [vmem:[%s4] sm:$0xf]
        %v1948 = vld [vmem:[%s4 + $0x4] sm:$0xf]
        %v1949 = vld [vmem:[%s4 + $0x8] sm:$0xf]
        %v1950 = vld [vmem:[%s4 + $0xc] sm:$0xf]
        %v1951 = vld [vmem:[%s4 + $0x10] sm:$0xf]
        %v1952 = vld [vmem:[%s4 + $0x14] sm:$0xf]
        %v1953 = vld [vmem:[%s4 + $0x18] sm:$0xf]
        %v1954 = vld [vmem:[%s4 + $0x1c] sm:$0xf]
        %v1955 = vld [vmem:[%s5] sm:$0x1]
        %v1957 = vlaneseq
        %v1958 = vshrl.u32 %v1957, 7
        %v1959 = vsub.s32 0, %v1958
        %v1960 = vrot.slane %v1955, %v1959
        %v1970 = vunpack.c.l.b16 %v1939
        %v1971 = vunpack.c.l.b16 %v1940
        %v1972 = vunpack.c.l.b16 %v1941
        %v1973 = vunpack.c.l.b16 %v1942
        %v1974 = vunpack.c.l.b16 %v1943
        %v1975 = vunpack.c.l.b16 %v1944
        %v1976 = vunpack.c.l.b16 %v1945
        %v1977 = vunpack.c.l.b16 %v1946
        %v1978 = vpack.c.b16 %v1971, %v1970
        %v1979 = vpack.c.b16 %v1973, %v1972
        %v1980 = vpack.c.b16 %v1975, %v1974
        %v1981 = vpack.c.b16 %v1977, %v1976
        %v1990 = vunpack.c.l.b16 %v1947
        %v1991 = vunpack.c.l.b16 %v1948
        %v1992 = vunpack.c.l.b16 %v1949
        %v1993 = vunpack.c.l.b16 %v1950
        %v1994 = vunpack.c.l.b16 %v1951
        %v1995 = vunpack.c.l.b16 %v1952
        %v1996 = vunpack.c.l.b16 %v1953
        %v1997 = vunpack.c.l.b16 %v1954
        %v1998 = vpack.c.b16 %v1991, %v1990
        %v1999 = vpack.c.b16 %v1993, %v1992
        %v2000 = vpack.c.b16 %v1995, %v1994
        %v2001 = vpack.c.b16 %v1997, %v1996
        %v2007 = vsel %vm668, %v1978, 0
        %v2010 = vsel %vm668, %v1979, 0
        %v2013 = vsel %vm668, %v1980, 0
        %v2016 = vsel %vm668, %v1981, 0
        %2018 = vmatprep.subr.bf16.mxu0 0
        %2019 = vmatpush1.bf16.msra.mxu0 0
        %2020 = vmatprep.subr.bf16.mxu0 0
        %2021 = vmatpush1.bf16.msra.mxu0 0
        %2022 = vmatprep.subr.bf16.mxu0 0
        %2023 = vmatpush1.bf16.msra.mxu0 0
        %2024 = vmatprep.subr.bf16.mxu0 0
        %2025 = vmatpush1.bf16.msra.mxu0 0
        %2026 = vmatprep.subr.bf16.mxu0 0
        %2027 = vmatpush1.bf16.msra.mxu0 %v2001
        %2028 = vmatprep.subr.bf16.mxu0 0
        %2029 = vmatpush1.bf16.msra.mxu0 %v2000
        %2030 = vmatprep.subr.bf16.mxu0 0
        %2031 = vmatpush1.bf16.msra.mxu0 %v1999
        %2032 = vmatprep.subr.bf16.mxu0 0
        %2033 = vmatpush1.bf16.msra.mxu0 %v1998
        %2034 = vmatprep.subr.bf16.mxu0 0
        %2035 = vmatpush2.bf16.msra.mxu0 0
        %2036 = vmatprep.subr.bf16.mxu0 0
        %2037 = vmatpush2.bf16.msra.mxu0 0
        %2038 = vmatprep.subr.bf16.mxu0 0
        %2039 = vmatpush2.bf16.msra.mxu0 0
        %2040 = vmatprep.subr.bf16.mxu0 0
        %2041 = vmatpush2.bf16.msra.mxu0 0
        %2042 = vmatprep.subr.bf16.mxu0 0
        %2043 = vmatpush2.bf16.msra.mxu0 0
        %2044 = vmatprep.subr.bf16.mxu0 0
        %2045 = vmatpush2.bf16.msra.mxu0 0
        %2046 = vmatprep.subr.bf16.mxu0 0
        %2047 = vmatpush2.bf16.msra.mxu0 0
        %2048 = vmatprep.subr.bf16.mxu0 0
        %2049 = vmatpush2.bf16.msra.mxu0 0
        %2050 = vmatprep.mubr.bf16.mxu0 0
        %2051 = vmatmul.mubr.bf16.gmra.mxu0 %v2007
        %v2052 = vpop.f32.mrf.mxu0
        %v2053 = vadd.f32 %v1960, %v2052
        %v2054 = vpop.f32.mrf.mxu0
        %v2055 = vpop.f32.mrf.mxu0
        %v2056 = vadd.f32 %v1960, %v2055
        %v2057 = vpop.f32.mrf.mxu0
        %2058 = vmatprep.mubr.bf16.mxu0 0
        %2059 = vmatmul.mubr.bf16.gmra.mxu0 %v2010
        %v2060 = vpop.f32.mrf.mxu0
        %v2061 = vadd.f32 %v1960, %v2060
        %v2062 = vpop.f32.mrf.mxu0
        %v2063 = vpop.f32.mrf.mxu0
        %v2064 = vadd.f32 %v1960, %v2063
        %v2065 = vpop.f32.mrf.mxu0
        %2066 = vmatprep.mubr.bf16.mxu0 0
        %2067 = vmatmul.mubr.bf16.gmra.mxu0 %v2013
        %v2068 = vpop.f32.mrf.mxu0
        %v2069 = vadd.f32 %v1960, %v2068
        %v2070 = vpop.f32.mrf.mxu0
        %v2071 = vpop.f32.mrf.mxu0
        %v2072 = vadd.f32 %v1960, %v2071
        %v2073 = vpop.f32.mrf.mxu0
        %2074 = vmatprep.mubr.bf16.mxu0 0
        %2075 = vmatmul.mubr.bf16.gmra.mxu0 %v2016
        %v2076 = vpop.f32.mrf.mxu0
        %v2077 = vadd.f32 %v1960, %v2076
        %v2078 = vpop.f32.mrf.mxu0
        %v2079 = vpop.f32.mrf.mxu0
        %v2080 = vadd.f32 %v1960, %v2079
        %v2081 = vpop.f32.mrf.mxu0
        %2082 = vdwg.mxu0
        %2083 = vst [vmem:[%s286] sm:$0xff] %v2053
        %2084 = vst [vmem:[%s286 + $0x8] sm:$0xff] %v2056
        %2085 = vst [vmem:[%s286 + $0x10] sm:$0xff] %v2061
        %2086 = vst [vmem:[%s286 + $0x18] sm:$0xff] %v2064
        %2087 = vst [vmem:[%s286 + $0x20] sm:$0xff] %v2069
        %2088 = vst [vmem:[%s286 + $0x28] sm:$0xff] %v2072
        %2089 = vst [vmem:[%s286 + $0x30] sm:$0xff] %v2077
        %2090 = vst [vmem:[%s286 + $0x38] sm:$0xff] %v2080
        %s2091 = sand.u32 %s182, 1
        %s2092 = scalar_lea.sflag [#allocation5], %s2091
        %s2093 = sand.u32 %s182, 1
        %s2094 = smul.addr %s2093, 64
        %s2095 = scalar_lea.vmem [#allocation6], %s2094
        // Predicated region
        $region53: #{tpu_custom_call.1} parent=47 // pred_check
          %p2096 = pneg %p192
        $region54: #{tpu_custom_call.1} parent=47 // pred_check_branch
          %2098 = sbr.rel (%p2096) target = $region56
        $region55: #{tpu_custom_call.1} parent=47 // pred_region
          %s2100 = ssub.s32 1024, 1024
          %2101 = vsyncadd %s2092, %s2100
          %s2102 = smul.addr %s22, 8
          %s2103 = smul.addr %s2102, 128
          %s2104 = scalar_lea.hbm %s7, %s2103
          %s2105 = sshll.u32 %s2095, 4
          %s2106 = int_to_ptr.vmem [resolvable:$true] %s2105
          %2111 = dma.vmem_to_hbm [thread:$0]  %s2106, 1024, %s2104, %s2092, 128, 128, 8
        $region56: #{tpu_custom_call.1} parent=47 // pred_fallthru
          _
      $region48: #{tpu_custom_call.1} parent=5 // pred_fallthru
        _
      %p2112 = scmp.le.s32.totalorder 2, %s17
      // Predicated region
      $region57: #{tpu_custom_call.1} parent=5 // pred_check
        %p2113 = pneg %p2112
      $region58: #{tpu_custom_call.1} parent=5 // pred_check_branch
        %2115 = sbr.rel (%p2113) target = $region60
      $region59: #{tpu_custom_call.1} parent=5 // pred_region
        %s2116 = ssub.s32 %s17, 2
        // Predicated region
        $region61: #{tpu_custom_call.1} parent=59 // pred_check
          %p2117 = pneg %p198
        $region62: #{tpu_custom_call.1} parent=59 // pred_check_branch
          %2119 = sbr.rel (%p2117) target = $region64
        $region63: #{tpu_custom_call.1} parent=59 // pred_region
          %s2120 = sand.u32 %s183, 1
          %s2121 = scalar_lea.sflag [#allocation5], %s2120
          %s2122 = sand.u32 %s183, 1
          %s2123 = smul.addr %s2122, 64
          %s2124 = scalar_lea.vmem [#allocation6], %s2123
          %2125 = dma.done %s2121, 1024
        $region64: #{tpu_custom_call.1} parent=59 // pred_fallthru
          _
      $region60: #{tpu_custom_call.1} parent=5 // pred_fallthru
        _
    $region6: #{tpu_custom_call.1} parent=1 // loop_footer
      %s21 = sadd.s32 1, %s17
    $region7: #{tpu_custom_call.1} parent=1 // loop_footer_branch
      %16 = sbr.rel target = $region3
    $region8: #{tpu_custom_call.1} parent=1 // loop_exit
      _
    %2126 = vsyncpa [#allocation4], 1
    %s2127 = scalar_lea.sflag [#allocation4], 1
    %2128 = vsyncpa %s2127, 1
    %2129 = vsyncpa [#allocation5], 1
    %s2130 = scalar_lea.sflag [#allocation5], 1
    %2131 = vsyncpa %s2130, 1

</llo_original>
